<compile_context>
chip_gen: v7x
topology: tpu7x:2x2x1
jax: 0.10.0
libtpu: 0.0.40
codegen_flags: <defaults>
</compile_context>

<pallas_src>
import numpy as np
import jax
import jax.numpy as jnp
from jax.experimental import pallas as pl
from jax.experimental.pallas import tpu as pltpu

NHEADS = 4


def _vmem_limit_bytes():
    """Generation-dependent VMEM limit: ~3/4 of physical capacity (guarded)."""
    cap = 64 * 1024 * 1024            # conservative fallback (v7x-sized)
    try:
        cap = int(getattr(pltpu.get_tpu_info(), "vmem_capacity_bytes", cap))
    except Exception:
        pass
    return (cap * 3) // 4


# ----------------------------------------------------------------------------
# Kernel 1: recurrent decoder (fused LSTMCell + per-head attention)
# grid=(1,), time recurrence is an in-kernel pl.loop over VMEM-resident slabs.
# ----------------------------------------------------------------------------
def decoder_kernel(gemb_ref, kh_ref, vh_ref, mask_ref, hx0_ref,
                   wrec_ref, wq_ref, bq_ref, wo_ref, bo_ref,
                   l_out_ref,
                   ah_sc, cx_sc):
    T = gemb_ref.shape[0]
    B, H = hx0_ref.shape
    NH = kh_ref.shape[0]
    DH = kh_ref.shape[3]

    # ---- loop-invariant loads (hoisted off the serial critical path) ----
    wrec = wrec_ref[...]                         # (2H, 4H)  [a-part ; hx-part] fused
    wq = wq_ref[...]                             # (H, H)    1/sqrt(DH) pre-folded
    bq = bq_ref[...]                             # (1, H)
    wo = wo_ref[...]                             # (H, H)
    bo = bo_ref[...]                             # (1, H)
    mask = mask_ref[...]                         # (B, 1, NE) additive
    k_heads = [kh_ref[h] for h in range(NH)]     # each (B, NE, DH)
    v_heads = [vh_ref[h] for h in range(NH)]
    wo_heads = [wo[h * DH:(h + 1) * DH, :] for h in range(NH)]   # each (DH, H)

    # state: ah = [a | hx] packed for the fused recurrent matmul; cx separate.
    hx0 = hx0_ref[...]
    ah_sc[:, 0:H] = jnp.zeros_like(hx0)          # a  = 0
    ah_sc[:, H:2 * H] = hx0                      # hx = mean(ents)
    cx_sc[...] = hx0                             # cx = hx

    @pl.loop(0, T)
    def _step(t):
        cx = cx_sc[...]

        # LSTMCell: one fused recurrent matmul; the embedding contribution
        # (emb @ W_ih[:, H:].T + b_ih + b_hh) was precomputed for all T.
        gates = (jnp.dot(ah_sc[...], wrec, preferred_element_type=jnp.float32)
                 + gemb_ref[t])                                    # (B, 4H)
        sig_if = jax.nn.sigmoid(gates[:, 0:2 * H])
        i_g = sig_if[:, 0:H]
        f_g = sig_if[:, H:2 * H]
        g_g = jnp.tanh(gates[:, 2 * H:3 * H])
        o_g = jax.nn.sigmoid(gates[:, 3 * H:4 * H])
        cx_new = f_g * cx + i_g * g_g
        hx_new = o_g * jnp.tanh(cx_new)

        # Multi-head attention: heads = static lane slices of q; K/V pre-laid
        # out per head; W_o split by head rows (no (B,H) context reassembly).
        q = jnp.dot(hx_new, wq, preferred_element_type=jnp.float32) + bq      # (B, H)
        a_new = bo
        for h in range(NH):
            qh = q[:, h * DH:(h + 1) * DH].reshape(B, 1, DH)
            s = jnp.einsum('bqd,bnd->bqn', qh, k_heads[h],
                           preferred_element_type=jnp.float32) + mask         # (B,1,NE)
            s = s - jnp.max(s, axis=-1, keepdims=True)
            w = jnp.exp(s)
            w = w / jnp.sum(w, axis=-1, keepdims=True)   # exact: feeds the recurrence
            ctx = jnp.einsum('bqn,bnd->bqd', w, v_heads[h],
                             preferred_element_type=jnp.float32)              # (B,1,DH)
            a_new = a_new + jnp.dot(ctx.reshape(B, DH), wo_heads[h],
                                    preferred_element_type=jnp.float32)       # (B, H)

        # state update + direct (un-concatenated) output stores
        cx_sc[...] = cx_new
        ah_sc[:, 0:H] = a_new
        ah_sc[:, H:2 * H] = hx_new
        l_out_ref[t, :, 0:H] = hx_new
        l_out_ref[t, :, H:2 * H] = a_new


# ----------------------------------------------------------------------------
# Kernel 2: output head (fused switch, vocab softmax, MatrixAttn copy, mix, log)
# grid=(B,) "parallel"; consumes the (T,B,2H) slab directly (no HBM transpose).
# ----------------------------------------------------------------------------
def head_kernel(l_ref, ents_ref, mask_ref,
                wout_ref, bout_ref, wma_ref, bma_ref,
                log_o_ref, z_ref):
    V = wout_ref.shape[1]
    NE = ents_ref.shape[0]
    H = wma_ref.shape[1] - 1              # W_sw folded in as the last column

    l = l_ref[...]                        # (T, 2H)
    ents = ents_ref[...]                  # (NE, H)
    m = mask_ref[...]                     # (1, NE)

    # gen = softmax(out(l))
    logits = jnp.dot(l, wout_ref[...],
                     preferred_element_type=jnp.float32) + bout_ref[...]      # (T, V)
    logits = logits - jnp.max(logits, axis=-1, keepdims=True)
    eg = jnp.exp(logits)
    gen = eg / jnp.sum(eg, axis=-1, keepdims=True)

    # MatrixAttn projection with the 1-column switch fused in as column H.
    dec_ext = jnp.dot(l, wma_ref[...],
                      preferred_element_type=jnp.float32) + bma_ref[...]      # (T, H+1)
    dec = dec_ext[:, 0:H]
    p = jax.nn.sigmoid(dec_ext[:, H:H + 1])                                   # (T, 1)

    un = jnp.einsum('th,nh->tn', dec, ents,
                    preferred_element_type=jnp.float32) + m                   # (T, NE)
    un = un - jnp.max(un, axis=-1, keepdims=True)
    ez = jnp.exp(un)
    z = ez / jnp.sum(ez, axis=-1, keepdims=True)

    log_o_ref[0, :, 0:V] = jnp.log(p * gen + 1e-6)
    log_o_ref[0, :, V:V + NE] = jnp.log((1.0 - p) * z + 1e-6)
    z_ref[0] = z


# ----------------------------------------------------------------------------
# Wrapper (glue: embedding lookup, gate/K-V pre-projection, weight re-layout)
# ----------------------------------------------------------------------------
def model_forward(params, tgt, ents, entlens):
    B, T = tgt.shape
    _, NE, H = ents.shape
    V = params['W_out'].shape[0]
    assert H % NHEADS == 0
    DH = H // NHEADS
    vmem_limit = _vmem_limit_bytes()

    ents = ents.astype(jnp.float32)

    # --- glue: embedding + hoisted input-gate matmul (one (T*B,H)@(H,4H)) ---
    e_tbh = jnp.transpose(params['emb'][tgt], (1, 0, 2)).astype(jnp.float32)   # (T,B,H)
    wih_a = params['W_ih'][:, :H].T                        # (H, 4H)  attn-input part
    wih_k = params['W_ih'][:, H:].T                        # (H, 4H)  embedding part
    whh = params['W_hh'].T                                 # (H, 4H)
    b_lstm = params['b_ih'] + params['b_hh']               # (4H,)
    # TODO(synk): at production T*B*4H, store gemb in bf16 or time-chunk it.
    gemb = (e_tbh.reshape(T * B, H) @ wih_k + b_lstm).reshape(T, B, 4 * H)
    wrec = jnp.concatenate([wih_a, whh], axis=0)           # (2H, 4H), rows = [a | hx]

    # --- glue: initial state + additive mask ---
    hx0 = jnp.mean(ents, axis=1)                                               # (B, H)
    addmask = jnp.where(jnp.arange(NE)[None, :] > entlens[:, None],
                        -1e9, 0.0).astype(jnp.float32)                         # (B, NE)
    mask3 = addmask[:, None, :]                                                # (B, 1, NE)

    # --- glue: K/V projections hoisted (one batched matmul each), per-head layout ---
    k_proj = jnp.einsum('bnh,kh->bnk', ents, params['W_k']) + params['b_k']    # (B, NE, H)
    v_proj = jnp.einsum('bnh,kh->bnk', ents, params['W_v']) + params['b_v']
    k_h = k_proj.reshape(B, NE, NHEADS, DH).transpose(2, 0, 1, 3)              # (NH,B,NE,DH)
    v_h = v_proj.reshape(B, NE, NHEADS, DH).transpose(2, 0, 1, 3)

    scale = 1.0 / (DH ** 0.5)
    wq = params['W_q'].T * scale                           # 1/sqrt(DH) folded into q proj
    bq = (params['b_q'] * scale)[None, :]
    wo = params['W_o'].T
    bo = params['b_o'][None, :]

    full = lambda nd: (lambda i: (0,) * nd)

    # TODO(synk): on v7x, add a leading "parallel" grid axis over batch halves
    # (2 TensorCores) and single-buffer the resident slabs with pl.Buffered(1).
    l_tb = pl.pallas_call(
        decoder_kernel,
        out_shape=jax.ShapeDtypeStruct((T, B, 2 * H), jnp.float32),
        grid=(1,),
        in_specs=[
            pl.BlockSpec((T, B, 4 * H), full(3)),                 # gemb (precomputed gates)
            pl.BlockSpec((NHEADS, B, NE, DH), full(4)),           # K per head
            pl.BlockSpec((NHEADS, B, NE, DH), full(4)),           # V per head
            pl.BlockSpec((B, 1, NE), full(3)),                    # additive mask
            pl.BlockSpec((B, H), full(2)),                        # hx0
            pl.BlockSpec((2 * H, 4 * H), full(2)),                # fused recurrent weights
            pl.BlockSpec((H, H), full(2)), pl.BlockSpec((1, H), full(2)),   # wq, bq (scaled)
            pl.BlockSpec((H, H), full(2)), pl.BlockSpec((1, H), full(2)),   # wo, bo
        ],
        out_specs=pl.BlockSpec((T, B, 2 * H), full(3)),
        scratch_shapes=[
            pltpu.VMEM((B, 2 * H), jnp.float32),    # packed [a | hx]
            pltpu.VMEM((B, H), jnp.float32),        # cx
        ],
        compiler_params=pltpu.CompilerParams(
            dimension_semantics=("arbitrary",),
            vmem_limit_bytes=vmem_limit),
    )(gemb, k_h, v_h, mask3, hx0, wrec, wq, bq, wo, bo)

    # --- output head: switch folded into W_ma as an extra column ---
    wout, bout = params['W_out'].T, params['b_out'][None, :]
    wma = jnp.concatenate([params['W_ma'].T, params['W_sw'].T], axis=1)   # (2H, H+1)
    bma = jnp.concatenate([params['b_ma'], params['b_sw']])[None, :]      # (1, H+1)

    # TODO(synk): at production vocab, tile the V dim of W_out with a grid axis
    # + two-pass softmax and pad V/NE to multiples of 128 for lane-dense stores.
    log_o, z = pl.pallas_call(
        head_kernel,
        out_shape=(jax.ShapeDtypeStruct((B, T, V + NE), jnp.float32),
                   jax.ShapeDtypeStruct((B, T, NE), jnp.float32)),
        grid=(B,),
        in_specs=[
            pl.BlockSpec((T, None, 2 * H), lambda b: (0, b, 0)),   # l slab, batch column b
            pl.BlockSpec((None, NE, H), lambda b: (b, 0, 0)),      # ents
            pl.BlockSpec((None, 1, NE), lambda b: (b, 0, 0)),      # additive mask
            pl.BlockSpec((2 * H, V), lambda b: (0, 0)),
            pl.BlockSpec((1, V), lambda b: (0, 0)),
            pl.BlockSpec((2 * H, H + 1), lambda b: (0, 0)),        # W_ma with W_sw folded in
            pl.BlockSpec((1, H + 1), lambda b: (0, 0)),
        ],
        out_specs=(pl.BlockSpec((1, T, V + NE), lambda b: (b, 0, 0)),
                   pl.BlockSpec((1, T, NE), lambda b: (b, 0, 0))),
        compiler_params=pltpu.CompilerParams(
            dimension_semantics=("parallel",),
            vmem_limit_bytes=vmem_limit),
    )(l_tb, ents, mask3, wout, bout, wma, bma)

    planlogits = None
    return log_o, z, planlogits


# ----------------------------------------------------------------------------
# Deterministic parameter init (shapes follow the nn.Module __init__)
# ----------------------------------------------------------------------------
def init_params(key, ntoks, hsz, tgttoks):
    ks = jax.random.split(key, 19)
    rn = lambda k, s, sc=0.1: (sc * jax.random.normal(k, s)).astype(jnp.float32)
    return {
        'emb':  rn(ks[0], (ntoks, hsz), 0.5),
        'W_ih': rn(ks[1], (4 * hsz, 2 * hsz)),
        'W_hh': rn(ks[2], (4 * hsz, hsz)),
        'b_ih': rn(ks[3], (4 * hsz,)),
        'b_hh': rn(ks[4], (4 * hsz,)),
        'W_out': rn(ks[5], (tgttoks, 2 * hsz)),
        'b_out': rn(ks[6], (tgttoks,)),
        'W_sw': rn(ks[7], (1, 2 * hsz)),
        'b_sw': rn(ks[8], (1,)),
        'W_q': rn(ks[9], (hsz, hsz)),  'b_q': rn(ks[10], (hsz,)),
        'W_k': rn(ks[11], (hsz, hsz)), 'b_k': rn(ks[12], (hsz,)),
        'W_v': rn(ks[13], (hsz, hsz)), 'b_v': rn(ks[14], (hsz,)),
        'W_o': rn(ks[15], (hsz, hsz)), 'b_o': rn(ks[16], (hsz,)),
        'W_ma': rn(ks[17], (hsz, 2 * hsz)), 'b_ma': rn(ks[18], (hsz,)),
    }


# ----------------------------------------------------------------------------
# Pure-JAX reference (mirrors the torch forward) used for validation
# ----------------------------------------------------------------------------
def reference_forward(params, tgt, ents, entlens, nheads=NHEADS):
    B, T = tgt.shape
    _, NE, H = ents.shape
    DH = H // nheads
    e = params['emb'][tgt]
    hx = jnp.mean(ents, axis=1)
    cx = hx
    a = jnp.zeros_like(hx)
    addmask = jnp.where(jnp.arange(NE)[None, :] > entlens[:, None], -1e9, 0.0)
    b = params['b_ih'] + params['b_hh']
    kk = ents @ params['W_k'].T + params['b_k']
    vv = ents @ params['W_v'].T + params['b_v']
    outs = []
    for t in range(T):
        prev = jnp.concatenate([a, e[:, t, :]], axis=1)
        gates = prev @ params['W_ih'].T + hx @ params['W_hh'].T + b
        i = jax.nn.sigmoid(gates[:, :H]); f = jax.nn.sigmoid(gates[:, H:2 * H])
        g = jnp.tanh(gates[:, 2 * H:3 * H]); o = jax.nn.sigmoid(gates[:, 3 * H:])
        cx = f * cx + i * g
        hx = o * jnp.tanh(cx)
        q = (hx @ params['W_q'].T + params['b_q']).reshape(B, nheads, DH)
        kh = kk.reshape(B, NE, nheads, DH)
        vh = vv.reshape(B, NE, nheads, DH)
        s = jnp.einsum('bhd,bnhd->bhn', q, kh) / (DH ** 0.5) + addmask[:, None, :]
        w = jax.nn.softmax(s, axis=-1)
        ctx = jnp.einsum('bhn,bnhd->bhd', w, vh).reshape(B, H)
        a = ctx @ params['W_o'].T + params['b_o']
        outs.append(jnp.concatenate([hx, a], axis=1))
    l = jnp.stack(outs, axis=1)
    p = jax.nn.sigmoid(l @ params['W_sw'].T + params['b_sw'])
    gen = jax.nn.softmax(l @ params['W_out'].T + params['b_out'], axis=-1)
    dec = l @ params['W_ma'].T + params['b_ma']
    un = jnp.einsum('bth,bnh->btn', dec, ents) + addmask[:, None, :]
    z = jax.nn.softmax(un, axis=-1)
    o = jnp.concatenate([p * gen, (1 - p) * z], axis=-1) + 1e-6
    return jnp.log(o), z


if __name__ == "__main__":
    B, T, NE = 2, 8, 6
    NTOKS, HSZ, TGTTOKS = 50, 32, 20

    key = jax.random.PRNGKey(0)
    kp, kt, ke = jax.random.split(key, 3)
    params = init_params(kp, NTOKS, HSZ, TGTTOKS)
    tgt = jax.random.randint(kt, (B, T), 0, NTOKS, dtype=jnp.int32)
    # TODO(synk): b.ent is normally run through list_encode; feed encoded entities directly.
    ents = (0.5 * jax.random.normal(ke, (B, NE, HSZ))).astype(jnp.float32)
    entlens = jnp.array([3, 5], dtype=jnp.int32)

    log_o, z, planlogits = model_forward(params, tgt, ents, entlens)
    jax.block_until_ready((log_o, z))

    ref_log_o, ref_z = reference_forward(params, tgt, ents, entlens)
    np.testing.assert_allclose(np.asarray(log_o), np.asarray(ref_log_o),
                               rtol=1e-2, atol=1e-2)
    np.testing.assert_allclose(np.asarray(z), np.asarray(ref_z),
                               rtol=1e-2, atol=1e-2)
    assert planlogits is None
    assert log_o.shape == (B, T, TGTTOKS + NE) and z.shape == (B, T, NE)

    print("KERNEL_OK")
</pallas_src>

<mosaic_0001>
module attributes {stable_mosaic.version = 11 : i64} {
  func.func @decoder_kernel(%arg0: i32, %arg1: memref<8x2x128xf32, #tpu.memory_space<vmem>>, %arg2: memref<4x2x6x8xf32, #tpu.memory_space<vmem>>, %arg3: memref<4x2x6x8xf32, #tpu.memory_space<vmem>>, %arg4: memref<2x1x6xf32, #tpu.memory_space<vmem>>, %arg5: memref<2x32xf32, #tpu.memory_space<vmem>>, %arg6: memref<64x128xf32, #tpu.memory_space<vmem>>, %arg7: memref<32x32xf32, #tpu.memory_space<vmem>>, %arg8: memref<1x32xf32, #tpu.memory_space<vmem>>, %arg9: memref<32x32xf32, #tpu.memory_space<vmem>>, %arg10: memref<1x32xf32, #tpu.memory_space<vmem>>, %arg11: memref<8x2x64xf32, #tpu.memory_space<vmem>>, %arg12: memref<2x64xf32, #tpu.memory_space<vmem>>, %arg13: memref<2x32xf32, #tpu.memory_space<vmem>>) attributes {dimension_semantics = [#tpu.dimension_semantics<arbitrary>], iteration_bounds = array<i64: 1>, scalar_prefetch = 0 : i64, scratch_operands = 2 : i64, tpu.core_type = #tpu.core_type<tc>, window_params = [{pipeline_mode = #tpu.pipeline_mode<synchronous>, transform_indices = @transform_0, window_bounds = array<i64: 8, 2, 128>}, {pipeline_mode = #tpu.pipeline_mode<synchronous>, transform_indices = @transform_1, window_bounds = array<i64: 4, 2, 6, 8>}, {pipeline_mode = #tpu.pipeline_mode<synchronous>, transform_indices = @transform_2, window_bounds = array<i64: 4, 2, 6, 8>}, {pipeline_mode = #tpu.pipeline_mode<synchronous>, transform_indices = @transform_3, window_bounds = array<i64: 2, 1, 6>}, {pipeline_mode = #tpu.pipeline_mode<synchronous>, transform_indices = @transform_4, window_bounds = array<i64: 2, 32>}, {pipeline_mode = #tpu.pipeline_mode<synchronous>, transform_indices = @transform_5, window_bounds = array<i64: 64, 128>}, {pipeline_mode = #tpu.pipeline_mode<synchronous>, transform_indices = @transform_6, window_bounds = array<i64: 32, 32>}, {pipeline_mode = #tpu.pipeline_mode<synchronous>, transform_indices = @transform_7, window_bounds = array<i64: 1, 32>}, {pipeline_mode = #tpu.pipeline_mode<synchronous>, transform_indices = @transform_8, window_bounds = array<i64: 32, 32>}, {pipeline_mode = #tpu.pipeline_mode<synchronous>, transform_indices = @transform_9, window_bounds = array<i64: 1, 32>}, {pipeline_mode = #tpu.pipeline_mode<synchronous>, transform_indices = @transform_10, window_bounds = array<i64: 8, 2, 64>}]} {
    %c0 = arith.constant 0 : index
    %c0_0 = arith.constant 0 : index
    %0 = vector.load %arg6[%c0, %c0_0] : memref<64x128xf32, #tpu.memory_space<vmem>>, vector<64x128xf32>
    %c0_1 = arith.constant 0 : index
    %c0_2 = arith.constant 0 : index
    %1 = vector.load %arg7[%c0_1, %c0_2] : memref<32x32xf32, #tpu.memory_space<vmem>>, vector<32x32xf32>
    %c0_3 = arith.constant 0 : index
    %c0_4 = arith.constant 0 : index
    %2 = vector.load %arg8[%c0_3, %c0_4] : memref<1x32xf32, #tpu.memory_space<vmem>>, vector<1x32xf32>
    %c0_5 = arith.constant 0 : index
    %c0_6 = arith.constant 0 : index
    %3 = vector.load %arg9[%c0_5, %c0_6] : memref<32x32xf32, #tpu.memory_space<vmem>>, vector<32x32xf32>
    %c0_7 = arith.constant 0 : index
    %c0_8 = arith.constant 0 : index
    %4 = vector.load %arg10[%c0_7, %c0_8] : memref<1x32xf32, #tpu.memory_space<vmem>>, vector<1x32xf32>
    %c0_9 = arith.constant 0 : index
    %c0_10 = arith.constant 0 : index
    %c0_11 = arith.constant 0 : index
    %5 = vector.load %arg4[%c0_9, %c0_10, %c0_11] : memref<2x1x6xf32, #tpu.memory_space<vmem>>, vector<2x1x6xf32>
    %c0_12 = arith.constant 0 : index
    %c0_13 = arith.constant 0 : index
    %c0_14 = arith.constant 0 : index
    %c0_15 = arith.constant 0 : index
    %6 = vector.load %arg2[%c0_12, %c0_13, %c0_14, %c0_15] : memref<4x2x6x8xf32, #tpu.memory_space<vmem>>, vector<1x2x6x8xf32>
    %7 = vector.shape_cast %6 : vector<1x2x6x8xf32> to vector<2x6x8xf32>
    %c1 = arith.constant 1 : index
    %c0_16 = arith.constant 0 : index
    %c0_17 = arith.constant 0 : index
    %c0_18 = arith.constant 0 : index
    %8 = vector.load %arg2[%c1, %c0_16, %c0_17, %c0_18] : memref<4x2x6x8xf32, #tpu.memory_space<vmem>>, vector<1x2x6x8xf32>
    %9 = vector.shape_cast %8 : vector<1x2x6x8xf32> to vector<2x6x8xf32>
    %c2 = arith.constant 2 : index
    %c0_19 = arith.constant 0 : index
    %c0_20 = arith.constant 0 : index
    %c0_21 = arith.constant 0 : index
    %10 = vector.load %arg2[%c2, %c0_19, %c0_20, %c0_21] : memref<4x2x6x8xf32, #tpu.memory_space<vmem>>, vector<1x2x6x8xf32>
    %11 = vector.shape_cast %10 : vector<1x2x6x8xf32> to vector<2x6x8xf32>
    %c3 = arith.constant 3 : index
    %c0_22 = arith.constant 0 : index
    %c0_23 = arith.constant 0 : index
    %c0_24 = arith.constant 0 : index
    %12 = vector.load %arg2[%c3, %c0_22, %c0_23, %c0_24] : memref<4x2x6x8xf32, #tpu.memory_space<vmem>>, vector<1x2x6x8xf32>
    %13 = vector.shape_cast %12 : vector<1x2x6x8xf32> to vector<2x6x8xf32>
    %c0_25 = arith.constant 0 : index
    %c0_26 = arith.constant 0 : index
    %c0_27 = arith.constant 0 : index
    %c0_28 = arith.constant 0 : index
    %14 = vector.load %arg3[%c0_25, %c0_26, %c0_27, %c0_28] : memref<4x2x6x8xf32, #tpu.memory_space<vmem>>, vector<1x2x6x8xf32>
    %15 = vector.shape_cast %14 : vector<1x2x6x8xf32> to vector<2x6x8xf32>
    %c1_29 = arith.constant 1 : index
    %c0_30 = arith.constant 0 : index
    %c0_31 = arith.constant 0 : index
    %c0_32 = arith.constant 0 : index
    %16 = vector.load %arg3[%c1_29, %c0_30, %c0_31, %c0_32] : memref<4x2x6x8xf32, #tpu.memory_space<vmem>>, vector<1x2x6x8xf32>
    %17 = vector.shape_cast %16 : vector<1x2x6x8xf32> to vector<2x6x8xf32>
    %c2_33 = arith.constant 2 : index
    %c0_34 = arith.constant 0 : index
    %c0_35 = arith.constant 0 : index
    %c0_36 = arith.constant 0 : index
    %18 = vector.load %arg3[%c2_33, %c0_34, %c0_35, %c0_36] : memref<4x2x6x8xf32, #tpu.memory_space<vmem>>, vector<1x2x6x8xf32>
    %19 = vector.shape_cast %18 : vector<1x2x6x8xf32> to vector<2x6x8xf32>
    %c3_37 = arith.constant 3 : index
    %c0_38 = arith.constant 0 : index
    %c0_39 = arith.constant 0 : index
    %c0_40 = arith.constant 0 : index
    %20 = vector.load %arg3[%c3_37, %c0_38, %c0_39, %c0_40] : memref<4x2x6x8xf32, #tpu.memory_space<vmem>>, vector<1x2x6x8xf32>
    %21 = vector.shape_cast %20 : vector<1x2x6x8xf32> to vector<2x6x8xf32>
    %22 = vector.extract_strided_slice %3 {offsets = [0, 0], sizes = [8, 32], strides = [1, 1]} : vector<32x32xf32> to vector<8x32xf32>
    %23 = vector.extract_strided_slice %3 {offsets = [8, 0], sizes = [8, 32], strides = [1, 1]} : vector<32x32xf32> to vector<8x32xf32>
    %24 = vector.extract_strided_slice %3 {offsets = [16, 0], sizes = [8, 32], strides = [1, 1]} : vector<32x32xf32> to vector<8x32xf32>
    %25 = vector.extract_strided_slice %3 {offsets = [24, 0], sizes = [8, 32], strides = [1, 1]} : vector<32x32xf32> to vector<8x32xf32>
    %c0_41 = arith.constant 0 : index
    %c0_42 = arith.constant 0 : index
    %26 = vector.load %arg5[%c0_41, %c0_42] : memref<2x32xf32, #tpu.memory_space<vmem>>, vector<2x32xf32>
    %cst = arith.constant 0.000000e+00 : f32
    %27 = vector.broadcast %cst : f32 to vector<2x32xf32>
    %c0_43 = arith.constant 0 : index
    %c0_44 = arith.constant 0 : index
    %28 = vector.load %arg12[%c0_43, %c0_44] : memref<2x64xf32, #tpu.memory_space<vmem>>, vector<2x32xf32>
    tpu.vector_store %arg12[%c0_43, %c0_44], %27 {strides = array<i32>} : memref<2x64xf32, #tpu.memory_space<vmem>>, vector<2x32xf32>,
    %c0_45 = arith.constant 0 : index
    %c32 = arith.constant 32 : index
    %29 = vector.load %arg12[%c0_45, %c32] : memref<2x64xf32, #tpu.memory_space<vmem>>, vector<2x32xf32>
    tpu.vector_store %arg12[%c0_45, %c32], %26 {strides = array<i32>} : memref<2x64xf32, #tpu.memory_space<vmem>>, vector<2x32xf32>,
    %c0_46 = arith.constant 0 : index
    %c0_47 = arith.constant 0 : index
    %30 = vector.load %arg13[%c0_46, %c0_47] : memref<2x32xf32, #tpu.memory_space<vmem>>, vector<2x32xf32>
    tpu.vector_store %arg13[%c0_46, %c0_47], %26 {strides = array<i32>} : memref<2x32xf32, #tpu.memory_space<vmem>>, vector<2x32xf32>,
    %c0_i32 = arith.constant 0 : i32
    %c8_i32 = arith.constant 8 : i32
    %31 = arith.addi %c0_i32, %c8_i32 : i32
    %c1_i32 = arith.constant 1 : i32
    scf.for %arg14 = %c0_i32 to %31 step %c1_i32  : i32 {
      %c1_i32_49 = arith.constant 1 : i32
      %32 = arith.muli %arg14, %c1_i32_49 : i32
      %c0_i32_50 = arith.constant 0 : i32
      %33 = arith.addi %c0_i32_50, %32 : i32
      %c0_51 = arith.constant 0 : index
      %c0_52 = arith.constant 0 : index
      %34 = vector.load %arg13[%c0_51, %c0_52] : memref<2x32xf32, #tpu.memory_space<vmem>>, vector<2x32xf32>
      %c0_53 = arith.constant 0 : index
      %c0_54 = arith.constant 0 : index
      %35 = vector.load %arg12[%c0_53, %c0_54] : memref<2x64xf32, #tpu.memory_space<vmem>>, vector<2x64xf32>
      %cst_55 = arith.constant dense<0.000000e+00> : vector<2x128xf32>
      %36 = tpu.matmul %35, %0, %cst_55 {dimension_numbers = #tpu.dot_dimension_numbers<[1], [0], [0], [1], [0, 0, 1, 1], [], []>} : vector<2x64xf32>, vector<64x128xf32>, vector<2x128xf32> -> vector<2x128xf32>
      %37 = arith.index_cast %33 : i32 to index
      %c0_56 = arith.constant 0 : index
      %c0_57 = arith.constant 0 : index
      %38 = vector.load %arg1[%37, %c0_56, %c0_57] : memref<8x2x128xf32, #tpu.memory_space<vmem>>, vector<1x2x128xf32>
      %39 = vector.shape_cast %38 : vector<1x2x128xf32> to vector<2x128xf32>
      %40 = arith.addf %36, %39 : vector<2x128xf32>
      %41 = vector.extract_strided_slice %40 {offsets = [0, 0], sizes = [2, 64], strides = [1, 1]} : vector<2x128xf32> to vector<2x64xf32>
      %42 = arith.negf %41 : vector<2x64xf32>
      %43 = math.exp %42 : vector<2x64xf32>
      %cst_58 = arith.constant 1.000000e+00 : f32
      %44 = vector.broadcast %cst_58 : f32 to vector<2x64xf32>
      %45 = arith.addf %44, %43 : vector<2x64xf32>
      %46 = arith.divf %44, %45 : vector<2x64xf32>
      %47 = vector.extract_strided_slice %46 {offsets = [0, 0], sizes = [2, 32], strides = [1, 1]} : vector<2x64xf32> to vector<2x32xf32>
      %48 = vector.extract_strided_slice %46 {offsets = [0, 32], sizes = [2, 32], strides = [1, 1]} : vector<2x64xf32> to vector<2x32xf32>
      %49 = vector.extract_strided_slice %40 {offsets = [0, 64], sizes = [2, 32], strides = [1, 1]} : vector<2x128xf32> to vector<2x32xf32>
      %50 = math.tanh %49 : vector<2x32xf32>
      %51 = vector.extract_strided_slice %40 {offsets = [0, 96], sizes = [2, 32], strides = [1, 1]} : vector<2x128xf32> to vector<2x32xf32>
      %52 = arith.negf %51 : vector<2x32xf32>
      %53 = math.exp %52 : vector<2x32xf32>
      %cst_59 = arith.constant 1.000000e+00 : f32
      %54 = vector.broadcast %cst_59 : f32 to vector<2x32xf32>
      %55 = arith.addf %54, %53 : vector<2x32xf32>
      %56 = arith.divf %54, %55 : vector<2x32xf32>
      %57 = arith.mulf %48, %34 : vector<2x32xf32>
      %58 = arith.mulf %47, %50 : vector<2x32xf32>
      %59 = arith.addf %57, %58 : vector<2x32xf32>
      %60 = math.tanh %59 : vector<2x32xf32>
      %61 = arith.mulf %56, %60 : vector<2x32xf32>
      %cst_60 = arith.constant dense<0.000000e+00> : vector<2x32xf32>
      %62 = tpu.matmul %61, %1, %cst_60 {dimension_numbers = #tpu.dot_dimension_numbers<[1], [0], [0], [1], [0, 0, 1, 1], [], []>} : vector<2x32xf32>, vector<32x32xf32>, vector<2x32xf32> -> vector<2x32xf32>
      %63 = vector.broadcast %2 : vector<1x32xf32> to vector<2x32xf32>
      %64 = arith.addf %62, %63 : vector<2x32xf32>
      %65 = vector.extract_strided_slice %64 {offsets = [0, 0], sizes = [2, 8], strides = [1, 1]} : vector<2x32xf32> to vector<2x8xf32>
      %66 = vector.shape_cast %65 : vector<2x8xf32> to vector<2x1x8xf32>
      "tpu.trace_start"() <{level = 10 : i32, message = "bqd,bnd->bqn"}> : () -> ()
      %cst_61 = arith.constant dense<0.000000e+00> : vector<2x1x6xf32>
      %67 = tpu.matmul %66, %7, %cst_61 {dimension_numbers = #tpu.dot_dimension_numbers<[2], [2], [1], [1], [0, 0, 0, 1, 1, 1], [0], [0]>} : vector<2x1x8xf32>, vector<2x6x8xf32>, vector<2x1x6xf32> -> vector<2x1x6xf32>
      "tpu.trace_stop"() : () -> ()
      %68 = arith.addf %67, %5 : vector<2x1x6xf32>
      %cst_62 = arith.constant dense<0xFF800000> : vector<2x1xf32>
      %69 = vector.multi_reduction <maximumf>, %68, %cst_62 [2] : vector<2x1x6xf32> to vector<2x1xf32>
      %70 = vector.shape_cast %69 : vector<2x1xf32> to vector<2x1x1xf32>
      %71 = vector.broadcast %70 : vector<2x1x1xf32> to vector<2x1x6xf32>
      %72 = arith.subf %68, %71 : vector<2x1x6xf32>
      %73 = math.exp %72 : vector<2x1x6xf32>
      %cst_63 = arith.constant dense<0.000000e+00> : vector<2x1xf32>
      %74 = vector.multi_reduction <add>, %73, %cst_63 [2] : vector<2x1x6xf32> to vector<2x1xf32>
      %75 = vector.shape_cast %74 : vector<2x1xf32> to vector<2x1x1xf32>
      %76 = vector.broadcast %75 : vector<2x1x1xf32> to vector<2x1x6xf32>
      %77 = arith.divf %73, %76 : vector<2x1x6xf32>
      "tpu.trace_start"() <{level = 10 : i32, message = "bqn,bnd->bqd"}> : () -> ()
      %cst_64 = arith.constant dense<0.000000e+00> : vector<2x1x8xf32>
      %78 = tpu.matmul %77, %15, %cst_64 {dimension_numbers = #tpu.dot_dimension_numbers<[2], [1], [1], [2], [0, 0, 0, 1, 1, 2], [0], [0]>} : vector<2x1x6xf32>, vector<2x6x8xf32>, vector<2x1x8xf32> -> vector<2x1x8xf32>
      "tpu.trace_stop"() : () -> ()
      %79 = vector.shape_cast %78 : vector<2x1x8xf32> to vector<2x8xf32>
      %cst_65 = arith.constant dense<0.000000e+00> : vector<2x32xf32>
      %80 = tpu.matmul %79, %22, %cst_65 {dimension_numbers = #tpu.dot_dimension_numbers<[1], [0], [0], [1], [0, 0, 1, 1], [], []>} : vector<2x8xf32>, vector<8x32xf32>, vector<2x32xf32> -> vector<2x32xf32>
      %81 = vector.broadcast %4 : vector<1x32xf32> to vector<2x32xf32>
      %82 = arith.addf %81, %80 : vector<2x32xf32>
      %83 = vector.extract_strided_slice %64 {offsets = [0, 8], sizes = [2, 8], strides = [1, 1]} : vector<2x32xf32> to vector<2x8xf32>
      %84 = vector.shape_cast %83 : vector<2x8xf32> to vector<2x1x8xf32>
      "tpu.trace_start"() <{level = 10 : i32, message = "bqd,bnd->bqn"}> : () -> ()
      %cst_66 = arith.constant dense<0.000000e+00> : vector<2x1x6xf32>
      %85 = tpu.matmul %84, %9, %cst_66 {dimension_numbers = #tpu.dot_dimension_numbers<[2], [2], [1], [1], [0, 0, 0, 1, 1, 1], [0], [0]>} : vector<2x1x8xf32>, vector<2x6x8xf32>, vector<2x1x6xf32> -> vector<2x1x6xf32>
      "tpu.trace_stop"() : () -> ()
      %86 = arith.addf %85, %5 : vector<2x1x6xf32>
      %cst_67 = arith.constant dense<0xFF800000> : vector<2x1xf32>
      %87 = vector.multi_reduction <maximumf>, %86, %cst_67 [2] : vector<2x1x6xf32> to vector<2x1xf32>
      %88 = vector.shape_cast %87 : vector<2x1xf32> to vector<2x1x1xf32>
      %89 = vector.broadcast %88 : vector<2x1x1xf32> to vector<2x1x6xf32>
      %90 = arith.subf %86, %89 : vector<2x1x6xf32>
      %91 = math.exp %90 : vector<2x1x6xf32>
      %cst_68 = arith.constant dense<0.000000e+00> : vector<2x1xf32>
      %92 = vector.multi_reduction <add>, %91, %cst_68 [2] : vector<2x1x6xf32> to vector<2x1xf32>
      %93 = vector.shape_cast %92 : vector<2x1xf32> to vector<2x1x1xf32>
      %94 = vector.broadcast %93 : vector<2x1x1xf32> to vector<2x1x6xf32>
      %95 = arith.divf %91, %94 : vector<2x1x6xf32>
      "tpu.trace_start"() <{level = 10 : i32, message = "bqn,bnd->bqd"}> : () -> ()
      %cst_69 = arith.constant dense<0.000000e+00> : vector<2x1x8xf32>
      %96 = tpu.matmul %95, %17, %cst_69 {dimension_numbers = #tpu.dot_dimension_numbers<[2], [1], [1], [2], [0, 0, 0, 1, 1, 2], [0], [0]>} : vector<2x1x6xf32>, vector<2x6x8xf32>, vector<2x1x8xf32> -> vector<2x1x8xf32>
      "tpu.trace_stop"() : () -> ()
      %97 = vector.shape_cast %96 : vector<2x1x8xf32> to vector<2x8xf32>
      %cst_70 = arith.constant dense<0.000000e+00> : vector<2x32xf32>
      %98 = tpu.matmul %97, %23, %cst_70 {dimension_numbers = #tpu.dot_dimension_numbers<[1], [0], [0], [1], [0, 0, 1, 1], [], []>} : vector<2x8xf32>, vector<8x32xf32>, vector<2x32xf32> -> vector<2x32xf32>
      %99 = arith.addf %82, %98 : vector<2x32xf32>
      %100 = vector.extract_strided_slice %64 {offsets = [0, 16], sizes = [2, 8], strides = [1, 1]} : vector<2x32xf32> to vector<2x8xf32>
      %101 = vector.shape_cast %100 : vector<2x8xf32> to vector<2x1x8xf32>
      "tpu.trace_start"() <{level = 10 : i32, message = "bqd,bnd->bqn"}> : () -> ()
      %cst_71 = arith.constant dense<0.000000e+00> : vector<2x1x6xf32>
      %102 = tpu.matmul %101, %11, %cst_71 {dimension_numbers = #tpu.dot_dimension_numbers<[2], [2], [1], [1], [0, 0, 0, 1, 1, 1], [0], [0]>} : vector<2x1x8xf32>, vector<2x6x8xf32>, vector<2x1x6xf32> -> vector<2x1x6xf32>
      "tpu.trace_stop"() : () -> ()
      %103 = arith.addf %102, %5 : vector<2x1x6xf32>
      %cst_72 = arith.constant dense<0xFF800000> : vector<2x1xf32>
      %104 = vector.multi_reduction <maximumf>, %103, %cst_72 [2] : vector<2x1x6xf32> to vector<2x1xf32>
      %105 = vector.shape_cast %104 : vector<2x1xf32> to vector<2x1x1xf32>
      %106 = vector.broadcast %105 : vector<2x1x1xf32> to vector<2x1x6xf32>
      %107 = arith.subf %103, %106 : vector<2x1x6xf32>
      %108 = math.exp %107 : vector<2x1x6xf32>
      %cst_73 = arith.constant dense<0.000000e+00> : vector<2x1xf32>
      %109 = vector.multi_reduction <add>, %108, %cst_73 [2] : vector<2x1x6xf32> to vector<2x1xf32>
      %110 = vector.shape_cast %109 : vector<2x1xf32> to vector<2x1x1xf32>
      %111 = vector.broadcast %110 : vector<2x1x1xf32> to vector<2x1x6xf32>
      %112 = arith.divf %108, %111 : vector<2x1x6xf32>
      "tpu.trace_start"() <{level = 10 : i32, message = "bqn,bnd->bqd"}> : () -> ()
      %cst_74 = arith.constant dense<0.000000e+00> : vector<2x1x8xf32>
      %113 = tpu.matmul %112, %19, %cst_74 {dimension_numbers = #tpu.dot_dimension_numbers<[2], [1], [1], [2], [0, 0, 0, 1, 1, 2], [0], [0]>} : vector<2x1x6xf32>, vector<2x6x8xf32>, vector<2x1x8xf32> -> vector<2x1x8xf32>
      "tpu.trace_stop"() : () -> ()
      %114 = vector.shape_cast %113 : vector<2x1x8xf32> to vector<2x8xf32>
      %cst_75 = arith.constant dense<0.000000e+00> : vector<2x32xf32>
      %115 = tpu.matmul %114, %24, %cst_75 {dimension_numbers = #tpu.dot_dimension_numbers<[1], [0], [0], [1], [0, 0, 1, 1], [], []>} : vector<2x8xf32>, vector<8x32xf32>, vector<2x32xf32> -> vector<2x32xf32>
      %116 = arith.addf %99, %115 : vector<2x32xf32>
      %117 = vector.extract_strided_slice %64 {offsets = [0, 24], sizes = [2, 8], strides = [1, 1]} : vector<2x32xf32> to vector<2x8xf32>
      %118 = vector.shape_cast %117 : vector<2x8xf32> to vector<2x1x8xf32>
      "tpu.trace_start"() <{level = 10 : i32, message = "bqd,bnd->bqn"}> : () -> ()
      %cst_76 = arith.constant dense<0.000000e+00> : vector<2x1x6xf32>
      %119 = tpu.matmul %118, %13, %cst_76 {dimension_numbers = #tpu.dot_dimension_numbers<[2], [2], [1], [1], [0, 0, 0, 1, 1, 1], [0], [0]>} : vector<2x1x8xf32>, vector<2x6x8xf32>, vector<2x1x6xf32> -> vector<2x1x6xf32>
      "tpu.trace_stop"() : () -> ()
      %120 = arith.addf %119, %5 : vector<2x1x6xf32>
      %cst_77 = arith.constant dense<0xFF800000> : vector<2x1xf32>
      %121 = vector.multi_reduction <maximumf>, %120, %cst_77 [2] : vector<2x1x6xf32> to vector<2x1xf32>
      %122 = vector.shape_cast %121 : vector<2x1xf32> to vector<2x1x1xf32>
      %123 = vector.broadcast %122 : vector<2x1x1xf32> to vector<2x1x6xf32>
      %124 = arith.subf %120, %123 : vector<2x1x6xf32>
      %125 = math.exp %124 : vector<2x1x6xf32>
      %cst_78 = arith.constant dense<0.000000e+00> : vector<2x1xf32>
      %126 = vector.multi_reduction <add>, %125, %cst_78 [2] : vector<2x1x6xf32> to vector<2x1xf32>
      %127 = vector.shape_cast %126 : vector<2x1xf32> to vector<2x1x1xf32>
      %128 = vector.broadcast %127 : vector<2x1x1xf32> to vector<2x1x6xf32>
      %129 = arith.divf %125, %128 : vector<2x1x6xf32>
      "tpu.trace_start"() <{level = 10 : i32, message = "bqn,bnd->bqd"}> : () -> ()
      %cst_79 = arith.constant dense<0.000000e+00> : vector<2x1x8xf32>
      %130 = tpu.matmul %129, %21, %cst_79 {dimension_numbers = #tpu.dot_dimension_numbers<[2], [1], [1], [2], [0, 0, 0, 1, 1, 2], [0], [0]>} : vector<2x1x6xf32>, vector<2x6x8xf32>, vector<2x1x8xf32> -> vector<2x1x8xf32>
      "tpu.trace_stop"() : () -> ()
      %131 = vector.shape_cast %130 : vector<2x1x8xf32> to vector<2x8xf32>
      %cst_80 = arith.constant dense<0.000000e+00> : vector<2x32xf32>
      %132 = tpu.matmul %131, %25, %cst_80 {dimension_numbers = #tpu.dot_dimension_numbers<[1], [0], [0], [1], [0, 0, 1, 1], [], []>} : vector<2x8xf32>, vector<8x32xf32>, vector<2x32xf32> -> vector<2x32xf32>
      %133 = arith.addf %116, %132 : vector<2x32xf32>
      %c0_81 = arith.constant 0 : index
      %c0_82 = arith.constant 0 : index
      %134 = vector.load %arg13[%c0_81, %c0_82] : memref<2x32xf32, #tpu.memory_space<vmem>>, vector<2x32xf32>
      tpu.vector_store %arg13[%c0_81, %c0_82], %59 {strides = array<i32>} : memref<2x32xf32, #tpu.memory_space<vmem>>, vector<2x32xf32>,
      %c0_83 = arith.constant 0 : index
      %c0_84 = arith.constant 0 : index
      %135 = vector.load %arg12[%c0_83, %c0_84] : memref<2x64xf32, #tpu.memory_space<vmem>>, vector<2x32xf32>
      tpu.vector_store %arg12[%c0_83, %c0_84], %133 {strides = array<i32>} : memref<2x64xf32, #tpu.memory_space<vmem>>, vector<2x32xf32>,
      %c0_85 = arith.constant 0 : index
      %c32_86 = arith.constant 32 : index
      %136 = vector.load %arg12[%c0_85, %c32_86] : memref<2x64xf32, #tpu.memory_space<vmem>>, vector<2x32xf32>
      tpu.vector_store %arg12[%c0_85, %c32_86], %61 {strides = array<i32>} : memref<2x64xf32, #tpu.memory_space<vmem>>, vector<2x32xf32>,
      %137 = arith.index_cast %33 : i32 to index
      %c0_87 = arith.constant 0 : index
      %c0_88 = arith.constant 0 : index
      %138 = vector.load %arg11[%137, %c0_87, %c0_88] : memref<8x2x64xf32, #tpu.memory_space<vmem>>, vector<1x2x32xf32>
      %139 = vector.shape_cast %138 : vector<1x2x32xf32> to vector<2x32xf32>
      %140 = vector.shape_cast %61 : vector<2x32xf32> to vector<1x2x32xf32>
      tpu.vector_store %arg11[%137, %c0_87, %c0_88], %140 {strides = array<i32>} : memref<8x2x64xf32, #tpu.memory_space<vmem>>, vector<1x2x32xf32>,
      %141 = arith.index_cast %33 : i32 to index
      %c0_89 = arith.constant 0 : index
      %c32_90 = arith.constant 32 : index
      %142 = vector.load %arg11[%141, %c0_89, %c32_90] : memref<8x2x64xf32, #tpu.memory_space<vmem>>, vector<1x2x32xf32>
      %143 = vector.shape_cast %142 : vector<1x2x32xf32> to vector<2x32xf32>
      %144 = vector.shape_cast %133 : vector<2x32xf32> to vector<1x2x32xf32>
      tpu.vector_store %arg11[%141, %c0_89, %c32_90], %144 {strides = array<i32>} : memref<8x2x64xf32, #tpu.memory_space<vmem>>, vector<1x2x32xf32>,
    }
    %c8_i32_48 = arith.constant 8 : i32
    return
  }
  func.func @transform_0(%arg0: i32) -> (i32, i32, i32) {
    %c0_i32 = arith.constant 0 : i32
    %c0_i32_0 = arith.constant 0 : i32
    %c0_i32_1 = arith.constant 0 : i32
    %c0_i32_2 = arith.constant 0 : i32
    return %c0_i32, %c0_i32_0, %c0_i32_1 : i32, i32, i32
  }
  func.func @transform_1(%arg0: i32) -> (i32, i32, i32, i32) {
    %c0_i32 = arith.constant 0 : i32
    %c0_i32_0 = arith.constant 0 : i32
    %c0_i32_1 = arith.constant 0 : i32
    %c0_i32_2 = arith.constant 0 : i32
    %c0_i32_3 = arith.constant 0 : i32
    return %c0_i32, %c0_i32_0, %c0_i32_1, %c0_i32_2 : i32, i32, i32, i32
  }
  func.func @transform_2(%arg0: i32) -> (i32, i32, i32, i32) {
    %c0_i32 = arith.constant 0 : i32
    %c0_i32_0 = arith.constant 0 : i32
    %c0_i32_1 = arith.constant 0 : i32
    %c0_i32_2 = arith.constant 0 : i32
    %c0_i32_3 = arith.constant 0 : i32
    return %c0_i32, %c0_i32_0, %c0_i32_1, %c0_i32_2 : i32, i32, i32, i32
  }
  func.func @transform_3(%arg0: i32) -> (i32, i32, i32) {
    %c0_i32 = arith.constant 0 : i32
    %c0_i32_0 = arith.constant 0 : i32
    %c0_i32_1 = arith.constant 0 : i32
    %c0_i32_2 = arith.constant 0 : i32
    return %c0_i32, %c0_i32_0, %c0_i32_1 : i32, i32, i32
  }
  func.func @transform_4(%arg0: i32) -> (i32, i32) {
    %c0_i32 = arith.constant 0 : i32
    %c0_i32_0 = arith.constant 0 : i32
    %c0_i32_1 = arith.constant 0 : i32
    return %c0_i32, %c0_i32_0 : i32, i32
  }
  func.func @transform_5(%arg0: i32) -> (i32, i32) {
    %c0_i32 = arith.constant 0 : i32
    %c0_i32_0 = arith.constant 0 : i32
    %c0_i32_1 = arith.constant 0 : i32
    return %c0_i32, %c0_i32_0 : i32, i32
  }
  func.func @transform_6(%arg0: i32) -> (i32, i32) {
    %c0_i32 = arith.constant 0 : i32
    %c0_i32_0 = arith.constant 0 : i32
    %c0_i32_1 = arith.constant 0 : i32
    return %c0_i32, %c0_i32_0 : i32, i32
  }
  func.func @transform_7(%arg0: i32) -> (i32, i32) {
    %c0_i32 = arith.constant 0 : i32
    %c0_i32_0 = arith.constant 0 : i32
    %c0_i32_1 = arith.constant 0 : i32
    return %c0_i32, %c0_i32_0 : i32, i32
  }
  func.func @transform_8(%arg0: i32) -> (i32, i32) {
    %c0_i32 = arith.constant 0 : i32
    %c0_i32_0 = arith.constant 0 : i32
    %c0_i32_1 = arith.constant 0 : i32
    return %c0_i32, %c0_i32_0 : i32, i32
  }
  func.func @transform_9(%arg0: i32) -> (i32, i32) {
    %c0_i32 = arith.constant 0 : i32
    %c0_i32_0 = arith.constant 0 : i32
    %c0_i32_1 = arith.constant 0 : i32
    return %c0_i32, %c0_i32_0 : i32, i32
  }
  func.func @transform_10(%arg0: i32) -> (i32, i32, i32) {
    %c0_i32 = arith.constant 0 : i32
    %c0_i32_0 = arith.constant 0 : i32
    %c0_i32_1 = arith.constant 0 : i32
    %c0_i32_2 = arith.constant 0 : i32
    return %c0_i32, %c0_i32_0, %c0_i32_1 : i32, i32, i32
  }
}

</mosaic_0001>

<llo_original>
// kernel: tpu_custom_call.1
$region0: #{tpu_custom_call.1}
  #allocation0 [shape = 'u32[]', space=smem, size = 0x4, offset = 0x4, fixed_abs, tag = 'smem constant byte address 0x4 - core index']
  #allocation1 [shape = 'u32[144,128]{1,0:T(1,128)}', space=vmem, size = 0x12000, scoped, tag = 'internal scratch']
  #allocation2 [shape = 'f32[2,64]{1,0:T(2,128)}', space=vmem, size = 0x400, scoped, tag = 'scratch operand']
  #allocation3 [shape = 'f32[2,32]{1,0:T(2,128)}', space=vmem, size = 0x400, scoped, tag = 'scratch operand']
  %s0 = inlined_call_operand.vmem [shape: f32[8,2,128], index: 0, kind: input, shape index: {}]
  %s1 = inlined_call_operand.vmem [shape: f32[4,2,6,8], index: 1, kind: input, shape index: {}]
  %s2 = inlined_call_operand.vmem [shape: f32[4,2,6,8], index: 2, kind: input, shape index: {}]
  %s3 = inlined_call_operand.vmem [shape: f32[2,1,6], index: 3, kind: input, shape index: {}]
  %s4 = inlined_call_operand.vmem [shape: f32[2,32], index: 4, kind: input, shape index: {}]
  %s5 = inlined_call_operand.vmem [shape: f32[64,128], index: 5, kind: input, shape index: {}]
  %s6 = inlined_call_operand.vmem [shape: f32[32,32], index: 6, kind: input, shape index: {}]
  %s7 = inlined_call_operand.vmem [shape: f32[1,32], index: 7, kind: input, shape index: {}]
  %s8 = inlined_call_operand.vmem [shape: f32[32,32], index: 8, kind: input, shape index: {}]
  %s9 = inlined_call_operand.vmem [shape: f32[1,32], index: 9, kind: input, shape index: {}]
  %s10 = inlined_call_operand.hbm [shape: f32[8,2,64], index: 10, kind: output, shape index: {}]
  %s11 = sld [smem:[#allocation0]]
  $region57: #{tpu_custom_call.1} parent=0
    _
  %s13 = ssub.s32 1, %s11
  %s14 = scalar_select 0, %s13, %s11
  $region1: #{tpu_custom_call.1} parent=0
    #allocation4 [shape = 'u8[8192]{0}', space=vmem, size = 0x2000, scoped, tag = 'output window, operand 0, single buffered']
    #allocation5 [shape = 's32[1]{0}', space=sflag, size = 0x4, scoped, tag = 'scoped memory for tpu_custom_call.1']
    %15 = vsyncpa [#allocation5], 0
    // Predicated region
    $region2: #{tpu_custom_call.1} parent=1 // pred_check
      _
    $region3: #{tpu_custom_call.1} parent=1 // pred_check_branch
      %17 = sbr.rel (0) target = $region5
    $region4: #{tpu_custom_call.1} parent=1 // pred_region
      _
    $region5: #{tpu_custom_call.1} parent=1 // pred_fallthru
      _
    // Predicated region
    $region6: #{tpu_custom_call.1} parent=1 // pred_check
      _
    $region7: #{tpu_custom_call.1} parent=1 // pred_check_branch
      %19 = sbr.rel (0) target = $region9
    $region8: #{tpu_custom_call.1} parent=1 // pred_region
      _
    $region9: #{tpu_custom_call.1} parent=1 // pred_fallthru
      _
    // Predicated region
    $region10: #{tpu_custom_call.1} parent=1 // pred_check
      _
    $region11: #{tpu_custom_call.1} parent=1 // pred_check_branch
      %21 = sbr.rel (0) target = $region13
    $region12: #{tpu_custom_call.1} parent=1 // pred_region
      _
    $region13: #{tpu_custom_call.1} parent=1 // pred_fallthru
      _
    // Predicated region
    $region14: #{tpu_custom_call.1} parent=1 // pred_check
      _
    $region15: #{tpu_custom_call.1} parent=1 // pred_check_branch
      %23 = sbr.rel (0) target = $region17
    $region16: #{tpu_custom_call.1} parent=1 // pred_region
      _
    $region17: #{tpu_custom_call.1} parent=1 // pred_fallthru
      _
    // Predicated region
    $region18: #{tpu_custom_call.1} parent=1 // pred_check
      _
    $region19: #{tpu_custom_call.1} parent=1 // pred_check_branch
      %25 = sbr.rel (0) target = $region21
    $region20: #{tpu_custom_call.1} parent=1 // pred_region
      _
    $region21: #{tpu_custom_call.1} parent=1 // pred_fallthru
      _
    // Predicated region
    $region22: #{tpu_custom_call.1} parent=1 // pred_check
      _
    $region23: #{tpu_custom_call.1} parent=1 // pred_check_branch
      %27 = sbr.rel (0) target = $region25
    $region24: #{tpu_custom_call.1} parent=1 // pred_region
      _
    $region25: #{tpu_custom_call.1} parent=1 // pred_fallthru
      _
    // Predicated region
    $region26: #{tpu_custom_call.1} parent=1 // pred_check
      _
    $region27: #{tpu_custom_call.1} parent=1 // pred_check_branch
      %29 = sbr.rel (0) target = $region29
    $region28: #{tpu_custom_call.1} parent=1 // pred_region
      _
    $region29: #{tpu_custom_call.1} parent=1 // pred_fallthru
      _
    // Predicated region
    $region30: #{tpu_custom_call.1} parent=1 // pred_check
      _
    $region31: #{tpu_custom_call.1} parent=1 // pred_check_branch
      %31 = sbr.rel (0) target = $region33
    $region32: #{tpu_custom_call.1} parent=1 // pred_region
      _
    $region33: #{tpu_custom_call.1} parent=1 // pred_fallthru
      _
    // Predicated region
    $region34: #{tpu_custom_call.1} parent=1 // pred_check
      _
    $region35: #{tpu_custom_call.1} parent=1 // pred_check_branch
      %33 = sbr.rel (0) target = $region37
    $region36: #{tpu_custom_call.1} parent=1 // pred_region
      _
    $region37: #{tpu_custom_call.1} parent=1 // pred_fallthru
      _
    // Predicated region
    $region38: #{tpu_custom_call.1} parent=1 // pred_check
      _
    $region39: #{tpu_custom_call.1} parent=1 // pred_check_branch
      %35 = sbr.rel (0) target = $region41
    $region40: #{tpu_custom_call.1} parent=1 // pred_region
      _
    $region41: #{tpu_custom_call.1} parent=1 // pred_fallthru
      _
    %v36 = vld [vmem:[%s5] sm:$0xff]
    %v37 = vld [vmem:[%s5 + $0x8] sm:$0xff]
    %v38 = vld [vmem:[%s5 + $0x10] sm:$0xff]
    %v39 = vld [vmem:[%s5 + $0x18] sm:$0xff]
    %v40 = vld [vmem:[%s5 + $0x20] sm:$0xff]
    %v41 = vld [vmem:[%s5 + $0x28] sm:$0xff]
    %v42 = vld [vmem:[%s5 + $0x30] sm:$0xff]
    %v43 = vld [vmem:[%s5 + $0x38] sm:$0xff]
    %v44 = vld [vmem:[%s6] sm:$0xff]
    %v45 = vld [vmem:[%s6 + $0x8] sm:$0xff]
    %v46 = vld [vmem:[%s6 + $0x10] sm:$0xff]
    %v47 = vld [vmem:[%s6 + $0x18] sm:$0xff]
    %v48 = vld [vmem:[%s7] sm:$0x1]
    %v49 = vld [vmem:[%s8] sm:$0xff]
    %v50 = vld [vmem:[%s8 + $0x8] sm:$0xff]
    %v51 = vld [vmem:[%s8 + $0x10] sm:$0xff]
    %v52 = vld [vmem:[%s8 + $0x18] sm:$0xff]
    %v53 = vld [vmem:[%s9] sm:$0x1]
    %v54 = vld [vmem:[%s3] sm:$0x1]
    %v55 = vld [vmem:[%s3 + $0x1] sm:$0x1]
    %v56 = vld [vmem:[%s1] sm:$0x3f]
    %v57 = vld [vmem:[%s1 + $0x8] sm:$0x3f]
    %s58 = scalar_lea.vmem %s1, 16
    %v59 = vld [vmem:[%s58] sm:$0x3f]
    %v60 = vld [vmem:[%s58 + $0x8] sm:$0x3f]
    %s61 = scalar_lea.vmem %s1, 32
    %v62 = vld [vmem:[%s61] sm:$0x3f]
    %v63 = vld [vmem:[%s61 + $0x8] sm:$0x3f]
    %s64 = scalar_lea.vmem %s1, 48
    %v65 = vld [vmem:[%s64] sm:$0x3f]
    %v66 = vld [vmem:[%s64 + $0x8] sm:$0x3f]
    %v67 = vld [vmem:[%s2] sm:$0x3f]
    %v68 = vld [vmem:[%s2 + $0x8] sm:$0x3f]
    %s69 = scalar_lea.vmem %s2, 16
    %v70 = vld [vmem:[%s69] sm:$0x3f]
    %v71 = vld [vmem:[%s69 + $0x8] sm:$0x3f]
    %s72 = scalar_lea.vmem %s2, 32
    %v73 = vld [vmem:[%s72] sm:$0x3f]
    %v74 = vld [vmem:[%s72 + $0x8] sm:$0x3f]
    %s75 = scalar_lea.vmem %s2, 48
    %v76 = vld [vmem:[%s75] sm:$0x3f]
    %v77 = vld [vmem:[%s75 + $0x8] sm:$0x3f]
    %v78 = vld [vmem:[%s4] sm:$0x3]
    %vm79 = vcmask 254976
    %80 = vst.msk [vmem:[#allocation2] sm:$0x3] %vm79, 0.0
    %82 = vrot.lane.b32.xlu0 %v78, 32
    %v83 = vpop.permute.xlu0 %82
    %vm85 = vcmask 517376
    %86 = vst.msk [vmem:[#allocation2] sm:$0x3] %vm85, %v83
    %87 = vst.msk [vmem:[#allocation3] sm:$0x3] %vm79, %v78
    loop: start=0, step=1, limit=8
    $region42: #{tpu_custom_call.1} parent=1 // loop_pre_header
      _
    $region43: #{tpu_custom_call.1} parent=1 // loop_header
      %s89 = sphi 0, %s93
      %p90 = scmp.ge.s32.totalorder %s89, 8
    $region44: #{tpu_custom_call.1} parent=1 // loop_header_branch
      %92 = sbr.rel (%p90) target = $region48
    $region45: #{tpu_custom_call.1} parent=1 // loop_body
      %v94 = vld [vmem:[#allocation3] sm:$0x3]
      %v95 = vld [vmem:[#allocation2] sm:$0x3]
      %s96 = smul.u32 %s89, 2
      %s97 = scalar_lea.vmem %s0, %s96
      %v98 = vld [vmem:[%s97] sm:$0x3]
      %vm99 = vcmask 523264
      %v101 = vsel %vm99, %v95, 0
      %103 = vmatprep.subr.mxu0 0.0
      %104 = vmatpush1.msra.mxu0 %v36
      %105 = vmatprep.subr.mxu0 0.0
      %106 = vmatpush1.msra.mxu0 %v37
      %107 = vmatprep.subr.mxu0 0.0
      %108 = vmatpush1.msra.mxu0 %v38
      %109 = vmatprep.subr.mxu0 0.0
      %110 = vmatpush1.msra.mxu0 %v39
      %111 = vmatprep.subr.mxu0 0.0
      %112 = vmatpush1.msra.mxu0 %v40
      %113 = vmatprep.subr.mxu0 0.0
      %114 = vmatpush1.msra.mxu0 %v41
      %115 = vmatprep.subr.mxu0 0.0
      %116 = vmatpush1.msra.mxu0 %v42
      %117 = vmatprep.subr.mxu0 0.0
      %118 = vmatpush1.msra.mxu0 %v43
      %119 = vmatprep.subr.mxu0 0.0
      %120 = vmatpush1.msra.mxu0 0.0
      %121 = vmatprep.subr.mxu0 0.0
      %122 = vmatpush1.msra.mxu0 0.0
      %123 = vmatprep.subr.mxu0 0.0
      %124 = vmatpush1.msra.mxu0 0.0
      %125 = vmatprep.subr.mxu0 0.0
      %126 = vmatpush1.msra.mxu0 0.0
      %127 = vmatprep.subr.mxu0 0.0
      %128 = vmatpush1.msra.mxu0 0.0
      %129 = vmatprep.subr.mxu0 0.0
      %130 = vmatpush1.msra.mxu0 0.0
      %131 = vmatprep.subr.mxu0 0.0
      %132 = vmatpush1.msra.mxu0 0.0
      %133 = vmatprep.subr.mxu0 0.0
      %134 = vmatpush1.msra.mxu0 0.0
      %135 = vmatprep.subr.mxu0 0.0
      %136 = vmatpush1.msra.mxu0 0.0
      %137 = vmatprep.subr.mxu0 0.0
      %138 = vmatpush1.msra.mxu0 0.0
      %139 = vmatprep.subr.mxu0 0.0
      %140 = vmatpush1.msra.mxu0 0.0
      %141 = vmatprep.subr.mxu0 0.0
      %142 = vmatpush1.msra.mxu0 0.0
      %143 = vmatprep.subr.mxu0 0.0
      %144 = vmatpush1.msra.mxu0 0.0
      %145 = vmatprep.subr.mxu0 0.0
      %146 = vmatpush1.msra.mxu0 0.0
      %147 = vmatprep.subr.mxu0 0.0
      %148 = vmatpush1.msra.mxu0 0.0
      %149 = vmatprep.subr.mxu0 0.0
      %150 = vmatpush1.msra.mxu0 0.0
      %151 = vmatprep.subr.mxu0 0.0
      %152 = vmatpush1.msra.mxu0 0.0
      %153 = vmatprep.subr.mxu0 0.0
      %154 = vmatpush1.msra.mxu0 0.0
      %155 = vmatprep.subr.mxu0 0.0
      %156 = vmatpush1.msra.mxu0 0.0
      %157 = vmatprep.subr.mxu0 0.0
      %158 = vmatpush1.msra.mxu0 0.0
      %159 = vmatprep.subr.mxu0 0.0
      %160 = vmatpush1.msra.mxu0 0.0
      %161 = vmatprep.subr.mxu0 0.0
      %162 = vmatpush1.msra.mxu0 0.0
      %163 = vmatprep.subr.mxu0 0.0
      %164 = vmatpush1.msra.mxu0 0.0
      %165 = vmatprep.subr.mxu0 0.0
      %166 = vmatpush1.msra.mxu0 0.0
      %167 = vmatprep.mubr.f32.mxu0 0.0
      %168 = vmatmul.mubr.f32.gmra.mrb[0].mxu0 %v101
      %v169 = vpop.f32.mrb[0].mxu0
      %v170 = vadd.f32 %v98, %v169
      %v171 = vpop.f32.mrb[0].mxu0
      %172 = vdwg.mxu0
      %v173 = vxor.u32 %v170, 2147483648
      %v174 = vmul.f32 %v173, 1.442695
      %v175 = vpow.pop %v174
      %v176 = vadd.f32 %v175, 1.0
      %v177 = vrcp.pop %v176
      %v178 = vmul.f32 1.0, %v177
      %v179 = vtanh.pop %v170
      %181 = vrot.lane.b32.xlu0 %v94, 32
      %v182 = vpop.permute.xlu0 %181
      %v184 = vmul.f32 %v178, %v182
      %186 = vrot.lane.b32.xlu0 %v179, 64
      %v187 = vpop.permute.xlu0 %186
      %v189 = vmul.f32 %v178, %v187
      %191 = vrot.lane.b32.xlu0 %v189, 32
      %v192 = vpop.permute.xlu0 %191
      %v194 = vadd.f32 %v184, %v192
      %v195 = vtanh.pop %v194
      %197 = vrot.lane.b32.xlu0 %v195, 64
      %v198 = vpop.permute.xlu0 %197
      %v200 = vmul.f32 %v178, %v198
      %v202 = vlaneseq
      %v203 = vshrl.u32 %v202, 7
      %v204 = vsub.s32 0, %v203
      %v205 = vrot.slane %v48, %v204
      %208 = vrot.lane.b32.xlu0 %v200, 32
      %v209 = vpop.permute.xlu0 %208
      %vm210 = vcmask 261120
      %v211 = vsel %vm210, %v209, 0
      %213 = vmatprep.subr.mxu0 0.0
      %214 = vmatpush1.msra.mxu0 %v44
      %215 = vmatprep.subr.mxu0 0.0
      %216 = vmatpush1.msra.mxu0 %v45
      %217 = vmatprep.subr.mxu0 0.0
      %218 = vmatpush1.msra.mxu0 %v46
      %219 = vmatprep.subr.mxu0 0.0
      %220 = vmatpush1.msra.mxu0 %v47
      %221 = vmatprep.subr.mxu0 0.0
      %222 = vmatpush1.msra.mxu0 0.0
      %223 = vmatprep.subr.mxu0 0.0
      %224 = vmatpush1.msra.mxu0 0.0
      %225 = vmatprep.subr.mxu0 0.0
      %226 = vmatpush1.msra.mxu0 0.0
      %227 = vmatprep.subr.mxu0 0.0
      %228 = vmatpush1.msra.mxu0 0.0
      %229 = vmatprep.subr.mxu0 0.0
      %230 = vmatpush1.msra.mxu0 0.0
      %231 = vmatprep.subr.mxu0 0.0
      %232 = vmatpush1.msra.mxu0 0.0
      %233 = vmatprep.subr.mxu0 0.0
      %234 = vmatpush1.msra.mxu0 0.0
      %235 = vmatprep.subr.mxu0 0.0
      %236 = vmatpush1.msra.mxu0 0.0
      %237 = vmatprep.subr.mxu0 0.0
      %238 = vmatpush1.msra.mxu0 0.0
      %239 = vmatprep.subr.mxu0 0.0
      %240 = vmatpush1.msra.mxu0 0.0
      %241 = vmatprep.subr.mxu0 0.0
      %242 = vmatpush1.msra.mxu0 0.0
      %243 = vmatprep.subr.mxu0 0.0
      %244 = vmatpush1.msra.mxu0 0.0
      %245 = vmatprep.subr.mxu0 0.0
      %246 = vmatpush1.msra.mxu0 0.0
      %247 = vmatprep.subr.mxu0 0.0
      %248 = vmatpush1.msra.mxu0 0.0
      %249 = vmatprep.subr.mxu0 0.0
      %250 = vmatpush1.msra.mxu0 0.0
      %251 = vmatprep.subr.mxu0 0.0
      %252 = vmatpush1.msra.mxu0 0.0
      %253 = vmatprep.subr.mxu0 0.0
      %254 = vmatpush1.msra.mxu0 0.0
      %255 = vmatprep.subr.mxu0 0.0
      %256 = vmatpush1.msra.mxu0 0.0
      %257 = vmatprep.subr.mxu0 0.0
      %258 = vmatpush1.msra.mxu0 0.0
      %259 = vmatprep.subr.mxu0 0.0
      %260 = vmatpush1.msra.mxu0 0.0
      %261 = vmatprep.subr.mxu0 0.0
      %262 = vmatpush1.msra.mxu0 0.0
      %263 = vmatprep.subr.mxu0 0.0
      %264 = vmatpush1.msra.mxu0 0.0
      %265 = vmatprep.subr.mxu0 0.0
      %266 = vmatpush1.msra.mxu0 0.0
      %267 = vmatprep.subr.mxu0 0.0
      %268 = vmatpush1.msra.mxu0 0.0
      %269 = vmatprep.subr.mxu0 0.0
      %270 = vmatpush1.msra.mxu0 0.0
      %271 = vmatprep.subr.mxu0 0.0
      %272 = vmatpush1.msra.mxu0 0.0
      %273 = vmatprep.subr.mxu0 0.0
      %274 = vmatpush1.msra.mxu0 0.0
      %275 = vmatprep.subr.mxu0 0.0
      %276 = vmatpush1.msra.mxu0 0.0
      %277 = vmatprep.mubr.f32.mxu0 0.0
      %278 = vmatmul.mubr.f32.gmra.mrb[0].mxu0 %v211
      %v279 = vpop.f32.mrb[0].mxu0
      %v280 = vadd.f32 %v205, %v279
      %v281 = vpop.f32.mrb[0].mxu0
      %282 = vdwg.mxu0
      %v285 = vunpack.c.l.s4 1966171168
      %v286 = vunpack.c.0.s8 %v285
      %v287 = vlaneseq
      %v288 = vshrl.u32 %v287, 7
      %v289 = vsub.s32 %v286, %v288
      %v290 = vrot.slane %v280, %v289
      %v291 = vcombine.high %v290, %v290
      %v293 = vunpack.c.l.s4 1966171168
      %v294 = vunpack.c.0.s8 %v293
      %v295 = vlaneseq
      %v296 = vshrl.u32 %v295, 7
      %v297 = vsub.s32 %v294, %v296
      %v298 = vrot.slane %v290, %v297
      %v300 = vunpack.c.l.s4 1966171168
      %v301 = vunpack.c.0.s8 %v300
      %v302 = vlaneseq
      %v303 = vshrl.u32 %v302, 7
      %v304 = vsub.s32 %v301, %v303
      %v305 = vrot.slane %v291, %v304
      %vm306 = vcmask 64512
      %v307 = vsel %vm306, %v298, 0
      %v310 = vsel %vm306, %v56, 0
      %312 = vmatprep.subr.mxu0 0.0
      %313 = vmatpush1.xpose.msra.mxu0 %v310
      %314 = vmatprep.subr.mxu0 0.0
      %315 = vmatpush1.xpose.msra.mxu0 0.0
      %316 = vmatprep.subr.mxu0 0.0
      %317 = vmatpush1.xpose.msra.mxu0 0.0
      %318 = vmatprep.subr.mxu0 0.0
      %319 = vmatpush1.xpose.msra.mxu0 0.0
      %320 = vmatprep.subr.mxu0 0.0
      %321 = vmatpush1.xpose.msra.mxu0 0.0
      %322 = vmatprep.subr.mxu0 0.0
      %323 = vmatpush1.xpose.msra.mxu0 0.0
      %324 = vmatprep.subr.mxu0 0.0
      %325 = vmatpush1.xpose.msra.mxu0 0.0
      %326 = vmatprep.subr.mxu0 0.0
      %327 = vmatpush1.xpose.msra.mxu0 0.0
      %328 = vmatprep.subr.mxu0 0.0
      %329 = vmatpush1.xpose.msra.mxu0 0.0
      %330 = vmatprep.subr.mxu0 0.0
      %331 = vmatpush1.xpose.msra.mxu0 0.0
      %332 = vmatprep.subr.mxu0 0.0
      %333 = vmatpush1.xpose.msra.mxu0 0.0
      %334 = vmatprep.subr.mxu0 0.0
      %335 = vmatpush1.xpose.msra.mxu0 0.0
      %336 = vmatprep.subr.mxu0 0.0
      %337 = vmatpush1.xpose.msra.mxu0 0.0
      %338 = vmatprep.subr.mxu0 0.0
      %339 = vmatpush1.xpose.msra.mxu0 0.0
      %340 = vmatprep.subr.mxu0 0.0
      %341 = vmatpush1.xpose.msra.mxu0 0.0
      %342 = vmatprep.subr.mxu0 0.0
      %343 = vmatpush1.xpose.msra.mxu0 0.0
      %344 = vmatprep.subr.mxu0 0.0
      %345 = vmatpush1.xpose.msra.mxu0 0.0
      %346 = vmatprep.subr.mxu0 0.0
      %347 = vmatpush1.xpose.msra.mxu0 0.0
      %348 = vmatprep.subr.mxu0 0.0
      %349 = vmatpush1.xpose.msra.mxu0 0.0
      %350 = vmatprep.subr.mxu0 0.0
      %351 = vmatpush1.xpose.msra.mxu0 0.0
      %352 = vmatprep.subr.mxu0 0.0
      %353 = vmatpush1.xpose.msra.mxu0 0.0
      %354 = vmatprep.subr.mxu0 0.0
      %355 = vmatpush1.xpose.msra.mxu0 0.0
      %356 = vmatprep.subr.mxu0 0.0
      %357 = vmatpush1.xpose.msra.mxu0 0.0
      %358 = vmatprep.subr.mxu0 0.0
      %359 = vmatpush1.xpose.msra.mxu0 0.0
      %360 = vmatprep.subr.mxu0 0.0
      %361 = vmatpush1.xpose.msra.mxu0 0.0
      %362 = vmatprep.subr.mxu0 0.0
      %363 = vmatpush1.xpose.msra.mxu0 0.0
      %364 = vmatprep.subr.mxu0 0.0
      %365 = vmatpush1.xpose.msra.mxu0 0.0
      %366 = vmatprep.subr.mxu0 0.0
      %367 = vmatpush1.xpose.msra.mxu0 0.0
      %368 = vmatprep.subr.mxu0 0.0
      %369 = vmatpush1.xpose.msra.mxu0 0.0
      %370 = vmatprep.subr.mxu0 0.0
      %371 = vmatpush1.xpose.msra.mxu0 0.0
      %372 = vmatprep.subr.mxu0 0.0
      %373 = vmatpush1.xpose.msra.mxu0 0.0
      %374 = vmatprep.subr.mxu0 0.0
      %375 = vmatpush1.xpose.msra.mxu0 0.0
      %376 = vmatprep.mubr.f32.mxu0 0.0
      %377 = vmatmul.mubr.f32.gmra.mrb[0].mxu0 %v307
      %v378 = vpop.f32.mrb[0].mxu0
      %v379 = vadd.f32 %v54, %v378
      %v380 = vpop.f32.mrb[0].mxu0
      %381 = vdwg.mxu0
      %v382 = vsel %vm306, %v305, 0
      %v385 = vsel %vm306, %v57, 0
      %387 = vmatprep.subr.mxu0 0.0
      %388 = vmatpush1.xpose.msra.mxu0 %v385
      %389 = vmatprep.subr.mxu0 0.0
      %390 = vmatpush1.xpose.msra.mxu0 0.0
      %391 = vmatprep.subr.mxu0 0.0
      %392 = vmatpush1.xpose.msra.mxu0 0.0
      %393 = vmatprep.subr.mxu0 0.0
      %394 = vmatpush1.xpose.msra.mxu0 0.0
      %395 = vmatprep.subr.mxu0 0.0
      %396 = vmatpush1.xpose.msra.mxu0 0.0
      %397 = vmatprep.subr.mxu0 0.0
      %398 = vmatpush1.xpose.msra.mxu0 0.0
      %399 = vmatprep.subr.mxu0 0.0
      %400 = vmatpush1.xpose.msra.mxu0 0.0
      %401 = vmatprep.subr.mxu0 0.0
      %402 = vmatpush1.xpose.msra.mxu0 0.0
      %403 = vmatprep.subr.mxu0 0.0
      %404 = vmatpush1.xpose.msra.mxu0 0.0
      %405 = vmatprep.subr.mxu0 0.0
      %406 = vmatpush1.xpose.msra.mxu0 0.0
      %407 = vmatprep.subr.mxu0 0.0
      %408 = vmatpush1.xpose.msra.mxu0 0.0
      %409 = vmatprep.subr.mxu0 0.0
      %410 = vmatpush1.xpose.msra.mxu0 0.0
      %411 = vmatprep.subr.mxu0 0.0
      %412 = vmatpush1.xpose.msra.mxu0 0.0
      %413 = vmatprep.subr.mxu0 0.0
      %414 = vmatpush1.xpose.msra.mxu0 0.0
      %415 = vmatprep.subr.mxu0 0.0
      %416 = vmatpush1.xpose.msra.mxu0 0.0
      %417 = vmatprep.subr.mxu0 0.0
      %418 = vmatpush1.xpose.msra.mxu0 0.0
      %419 = vmatprep.subr.mxu0 0.0
      %420 = vmatpush1.xpose.msra.mxu0 0.0
      %421 = vmatprep.subr.mxu0 0.0
      %422 = vmatpush1.xpose.msra.mxu0 0.0
      %423 = vmatprep.subr.mxu0 0.0
      %424 = vmatpush1.xpose.msra.mxu0 0.0
      %425 = vmatprep.subr.mxu0 0.0
      %426 = vmatpush1.xpose.msra.mxu0 0.0
      %427 = vmatprep.subr.mxu0 0.0
      %428 = vmatpush1.xpose.msra.mxu0 0.0
      %429 = vmatprep.subr.mxu0 0.0
      %430 = vmatpush1.xpose.msra.mxu0 0.0
      %431 = vmatprep.subr.mxu0 0.0
      %432 = vmatpush1.xpose.msra.mxu0 0.0
      %433 = vmatprep.subr.mxu0 0.0
      %434 = vmatpush1.xpose.msra.mxu0 0.0
      %435 = vmatprep.subr.mxu0 0.0
      %436 = vmatpush1.xpose.msra.mxu0 0.0
      %437 = vmatprep.subr.mxu0 0.0
      %438 = vmatpush1.xpose.msra.mxu0 0.0
      %439 = vmatprep.subr.mxu0 0.0
      %440 = vmatpush1.xpose.msra.mxu0 0.0
      %441 = vmatprep.subr.mxu0 0.0
      %442 = vmatpush1.xpose.msra.mxu0 0.0
      %443 = vmatprep.subr.mxu0 0.0
      %444 = vmatpush1.xpose.msra.mxu0 0.0
      %445 = vmatprep.subr.mxu0 0.0
      %446 = vmatpush1.xpose.msra.mxu0 0.0
      %447 = vmatprep.subr.mxu0 0.0
      %448 = vmatpush1.xpose.msra.mxu0 0.0
      %449 = vmatprep.subr.mxu0 0.0
      %450 = vmatpush1.xpose.msra.mxu0 0.0
      %451 = vmatprep.mubr.f32.mxu0 0.0
      %452 = vmatmul.mubr.f32.gmra.mrb[0].mxu0 %v382
      %v453 = vpop.f32.mrb[0].mxu0
      %v454 = vadd.f32 %v55, %v453
      %v455 = vpop.f32.mrb[0].mxu0
      %456 = vdwg.mxu0
      %vm457 = vcmask 40960
      %v458 = vsel %vm457, %v379, -inf
      %459 = vmax.xlane.f32.xlu0 %v458
      %v460 = vpop.xlane.xlu0 %459
      %v461 = vsel %vm457, %v454, -inf
      %462 = vmax.xlane.f32.xlu0 %v461
      %v463 = vpop.xlane.xlu0 %462
      %v464 = vsub.f32 %v379, %v460
      %v465 = vsub.f32 %v454, %v463
      %v466 = vmul.f32 %v464, 1.442695
      %v467 = vpow.pop %v466
      %v468 = vmul.f32 %v465, 1.442695
      %v469 = vpow.pop %v468
      %v470 = vsel %vm457, %v467, 0.0
      %471 = vadd.xlane.f32.xlu0 %v470
      %v472 = vpop.xlane.xlu0 %471
      %v473 = vsel %vm457, %v469, 0.0
      %474 = vadd.xlane.f32.xlu0 %v473
      %v475 = vpop.xlane.xlu0 %474
      %v476 = vrcp.pop %v472
      %v477 = vmul.f32 %v467, %v476
      %v478 = vrcp.pop %v475
      %v479 = vmul.f32 %v469, %v478
      %vm480 = vcmask 48128
      %v482 = vsel %vm480, %v477, 0
      %vm484 = vcmask 1045504
      %v486 = vsel %vm484, %v67, 0
      %488 = vmatprep.subr.mxu0 0.0
      %489 = vmatpush1.msra.mxu0 %v486
      %490 = vmatprep.subr.mxu0 0.0
      %491 = vmatpush1.msra.mxu0 0.0
      %492 = vmatprep.subr.mxu0 0.0
      %493 = vmatpush1.msra.mxu0 0.0
      %494 = vmatprep.subr.mxu0 0.0
      %495 = vmatpush1.msra.mxu0 0.0
      %496 = vmatprep.subr.mxu0 0.0
      %497 = vmatpush1.msra.mxu0 0.0
      %498 = vmatprep.subr.mxu0 0.0
      %499 = vmatpush1.msra.mxu0 0.0
      %500 = vmatprep.subr.mxu0 0.0
      %501 = vmatpush1.msra.mxu0 0.0
      %502 = vmatprep.subr.mxu0 0.0
      %503 = vmatpush1.msra.mxu0 0.0
      %504 = vmatprep.subr.mxu0 0.0
      %505 = vmatpush1.msra.mxu0 0.0
      %506 = vmatprep.subr.mxu0 0.0
      %507 = vmatpush1.msra.mxu0 0.0
      %508 = vmatprep.subr.mxu0 0.0
      %509 = vmatpush1.msra.mxu0 0.0
      %510 = vmatprep.subr.mxu0 0.0
      %511 = vmatpush1.msra.mxu0 0.0
      %512 = vmatprep.subr.mxu0 0.0
      %513 = vmatpush1.msra.mxu0 0.0
      %514 = vmatprep.subr.mxu0 0.0
      %515 = vmatpush1.msra.mxu0 0.0
      %516 = vmatprep.subr.mxu0 0.0
      %517 = vmatpush1.msra.mxu0 0.0
      %518 = vmatprep.subr.mxu0 0.0
      %519 = vmatpush1.msra.mxu0 0.0
      %520 = vmatprep.subr.mxu0 0.0
      %521 = vmatpush1.msra.mxu0 0.0
      %522 = vmatprep.subr.mxu0 0.0
      %523 = vmatpush1.msra.mxu0 0.0
      %524 = vmatprep.subr.mxu0 0.0
      %525 = vmatpush1.msra.mxu0 0.0
      %526 = vmatprep.subr.mxu0 0.0
      %527 = vmatpush1.msra.mxu0 0.0
      %528 = vmatprep.subr.mxu0 0.0
      %529 = vmatpush1.msra.mxu0 0.0
      %530 = vmatprep.subr.mxu0 0.0
      %531 = vmatpush1.msra.mxu0 0.0
      %532 = vmatprep.subr.mxu0 0.0
      %533 = vmatpush1.msra.mxu0 0.0
      %534 = vmatprep.subr.mxu0 0.0
      %535 = vmatpush1.msra.mxu0 0.0
      %536 = vmatprep.subr.mxu0 0.0
      %537 = vmatpush1.msra.mxu0 0.0
      %538 = vmatprep.subr.mxu0 0.0
      %539 = vmatpush1.msra.mxu0 0.0
      %540 = vmatprep.subr.mxu0 0.0
      %541 = vmatpush1.msra.mxu0 0.0
      %542 = vmatprep.subr.mxu0 0.0
      %543 = vmatpush1.msra.mxu0 0.0
      %544 = vmatprep.subr.mxu0 0.0
      %545 = vmatpush1.msra.mxu0 0.0
      %546 = vmatprep.subr.mxu0 0.0
      %547 = vmatpush1.msra.mxu0 0.0
      %548 = vmatprep.subr.mxu0 0.0
      %549 = vmatpush1.msra.mxu0 0.0
      %550 = vmatprep.subr.mxu0 0.0
      %551 = vmatpush1.msra.mxu0 0.0
      %552 = vmatprep.mubr.f32.mxu0 0.0
      %553 = vmatmul.mubr.f32.gmra.mrb[0].mxu0 %v482
      %v554 = vpop.f32.mrb[0].mxu0
      %v555 = vadd.f32 0.0, %v554
      %v556 = vpop.f32.mrb[0].mxu0
      %557 = vdwg.mxu0
      %v559 = vsel %vm480, %v479, 0
      %v562 = vsel %vm484, %v68, 0
      %564 = vmatprep.subr.mxu0 0.0
      %565 = vmatpush1.msra.mxu0 %v562
      %566 = vmatprep.subr.mxu0 0.0
      %567 = vmatpush1.msra.mxu0 0.0
      %568 = vmatprep.subr.mxu0 0.0
      %569 = vmatpush1.msra.mxu0 0.0
      %570 = vmatprep.subr.mxu0 0.0
      %571 = vmatpush1.msra.mxu0 0.0
      %572 = vmatprep.subr.mxu0 0.0
      %573 = vmatpush1.msra.mxu0 0.0
      %574 = vmatprep.subr.mxu0 0.0
      %575 = vmatpush1.msra.mxu0 0.0
      %576 = vmatprep.subr.mxu0 0.0
      %577 = vmatpush1.msra.mxu0 0.0
      %578 = vmatprep.subr.mxu0 0.0
      %579 = vmatpush1.msra.mxu0 0.0
      %580 = vmatprep.subr.mxu0 0.0
      %581 = vmatpush1.msra.mxu0 0.0
      %582 = vmatprep.subr.mxu0 0.0
      %583 = vmatpush1.msra.mxu0 0.0
      %584 = vmatprep.subr.mxu0 0.0
      %585 = vmatpush1.msra.mxu0 0.0
      %586 = vmatprep.subr.mxu0 0.0
      %587 = vmatpush1.msra.mxu0 0.0
      %588 = vmatprep.subr.mxu0 0.0
      %589 = vmatpush1.msra.mxu0 0.0
      %590 = vmatprep.subr.mxu0 0.0
      %591 = vmatpush1.msra.mxu0 0.0
      %592 = vmatprep.subr.mxu0 0.0
      %593 = vmatpush1.msra.mxu0 0.0
      %594 = vmatprep.subr.mxu0 0.0
      %595 = vmatpush1.msra.mxu0 0.0
      %596 = vmatprep.subr.mxu0 0.0
      %597 = vmatpush1.msra.mxu0 0.0
      %598 = vmatprep.subr.mxu0 0.0
      %599 = vmatpush1.msra.mxu0 0.0
      %600 = vmatprep.subr.mxu0 0.0
      %601 = vmatpush1.msra.mxu0 0.0
      %602 = vmatprep.subr.mxu0 0.0
      %603 = vmatpush1.msra.mxu0 0.0
      %604 = vmatprep.subr.mxu0 0.0
      %605 = vmatpush1.msra.mxu0 0.0
      %606 = vmatprep.subr.mxu0 0.0
      %607 = vmatpush1.msra.mxu0 0.0
      %608 = vmatprep.subr.mxu0 0.0
      %609 = vmatpush1.msra.mxu0 0.0
      %610 = vmatprep.subr.mxu0 0.0
      %611 = vmatpush1.msra.mxu0 0.0
      %612 = vmatprep.subr.mxu0 0.0
      %613 = vmatpush1.msra.mxu0 0.0
      %614 = vmatprep.subr.mxu0 0.0
      %615 = vmatpush1.msra.mxu0 0.0
      %616 = vmatprep.subr.mxu0 0.0
      %617 = vmatpush1.msra.mxu0 0.0
      %618 = vmatprep.subr.mxu0 0.0
      %619 = vmatpush1.msra.mxu0 0.0
      %620 = vmatprep.subr.mxu0 0.0
      %621 = vmatpush1.msra.mxu0 0.0
      %622 = vmatprep.subr.mxu0 0.0
      %623 = vmatpush1.msra.mxu0 0.0
      %624 = vmatprep.subr.mxu0 0.0
      %625 = vmatpush1.msra.mxu0 0.0
      %626 = vmatprep.subr.mxu0 0.0
      %627 = vmatpush1.msra.mxu0 0.0
      %628 = vmatprep.mubr.f32.mxu0 0.0
      %629 = vmatmul.mubr.f32.gmra.mrb[0].mxu0 %v559
      %v630 = vpop.f32.mrb[0].mxu0
      %v631 = vadd.f32 0.0, %v630
      %v632 = vpop.f32.mrb[0].mxu0
      %633 = vdwg.mxu0
      %v636 = vrot.slane %v631, 7
      %vm637 = vcmask 1041409
      %v638 = vsel %vm637, %v636, %v555
      %v639 = vsel %vm306, %v638, 0
      %641 = vmatprep.subr.mxu0 0.0
      %642 = vmatpush1.msra.mxu0 %v49
      %643 = vmatprep.subr.mxu0 0.0
      %644 = vmatpush1.msra.mxu0 0.0
      %645 = vmatprep.subr.mxu0 0.0
      %646 = vmatpush1.msra.mxu0 0.0
      %647 = vmatprep.subr.mxu0 0.0
      %648 = vmatpush1.msra.mxu0 0.0
      %649 = vmatprep.subr.mxu0 0.0
      %650 = vmatpush1.msra.mxu0 0.0
      %651 = vmatprep.subr.mxu0 0.0
      %652 = vmatpush1.msra.mxu0 0.0
      %653 = vmatprep.subr.mxu0 0.0
      %654 = vmatpush1.msra.mxu0 0.0
      %655 = vmatprep.subr.mxu0 0.0
      %656 = vmatpush1.msra.mxu0 0.0
      %657 = vmatprep.subr.mxu0 0.0
      %658 = vmatpush1.msra.mxu0 0.0
      %659 = vmatprep.subr.mxu0 0.0
      %660 = vmatpush1.msra.mxu0 0.0
      %661 = vmatprep.subr.mxu0 0.0
      %662 = vmatpush1.msra.mxu0 0.0
      %663 = vmatprep.subr.mxu0 0.0
      %664 = vmatpush1.msra.mxu0 0.0
      %665 = vmatprep.subr.mxu0 0.0
      %666 = vmatpush1.msra.mxu0 0.0
      %667 = vmatprep.subr.mxu0 0.0
      %668 = vmatpush1.msra.mxu0 0.0
      %669 = vmatprep.subr.mxu0 0.0
      %670 = vmatpush1.msra.mxu0 0.0
      %671 = vmatprep.subr.mxu0 0.0
      %672 = vmatpush1.msra.mxu0 0.0
      %673 = vmatprep.subr.mxu0 0.0
      %674 = vmatpush1.msra.mxu0 0.0
      %675 = vmatprep.subr.mxu0 0.0
      %676 = vmatpush1.msra.mxu0 0.0
      %677 = vmatprep.subr.mxu0 0.0
      %678 = vmatpush1.msra.mxu0 0.0
      %679 = vmatprep.subr.mxu0 0.0
      %680 = vmatpush1.msra.mxu0 0.0
      %681 = vmatprep.subr.mxu0 0.0
      %682 = vmatpush1.msra.mxu0 0.0
      %683 = vmatprep.subr.mxu0 0.0
      %684 = vmatpush1.msra.mxu0 0.0
      %685 = vmatprep.subr.mxu0 0.0
      %686 = vmatpush1.msra.mxu0 0.0
      %687 = vmatprep.subr.mxu0 0.0
      %688 = vmatpush1.msra.mxu0 0.0
      %689 = vmatprep.subr.mxu0 0.0
      %690 = vmatpush1.msra.mxu0 0.0
      %691 = vmatprep.subr.mxu0 0.0
      %692 = vmatpush1.msra.mxu0 0.0
      %693 = vmatprep.subr.mxu0 0.0
      %694 = vmatpush1.msra.mxu0 0.0
      %695 = vmatprep.subr.mxu0 0.0
      %696 = vmatpush1.msra.mxu0 0.0
      %697 = vmatprep.subr.mxu0 0.0
      %698 = vmatpush1.msra.mxu0 0.0
      %699 = vmatprep.subr.mxu0 0.0
      %700 = vmatpush1.msra.mxu0 0.0
      %701 = vmatprep.subr.mxu0 0.0
      %702 = vmatpush1.msra.mxu0 0.0
      %703 = vmatprep.subr.mxu0 0.0
      %704 = vmatpush1.msra.mxu0 0.0
      %705 = vmatprep.mubr.f32.mxu0 0.0
      %706 = vmatmul.mubr.f32.gmra.mrb[0].mxu0 %v639
      %v707 = vpop.f32.mrb[0].mxu0
      %v708 = vadd.f32 0.0, %v707
      %v709 = vpop.f32.mrb[0].mxu0
      %710 = vdwg.mxu0
      %v712 = vlaneseq
      %v713 = vshrl.u32 %v712, 7
      %v714 = vsub.s32 0, %v713
      %v715 = vrot.slane %v53, %v714
      %v717 = vadd.f32 %v715, %v708
      %v718 = vlaneseq
      %v719 = vshrl.u32 %v718, 7
      %v720 = vsub.s32 0, %v719
      %v721 = vrot.slane %v298, %v720
      %722 = vrot.lane.b32.xlu0 %v721, 120
      %v723 = vpop.permute.xlu0 %722
      %v724 = vsel %vm306, %v723, 0
      %v727 = vsel %vm306, %v59, 0
      %729 = vmatprep.subr.mxu0 0.0
      %730 = vmatpush1.xpose.msra.mxu0 %v727
      %731 = vmatprep.subr.mxu0 0.0
      %732 = vmatpush1.xpose.msra.mxu0 0.0
      %733 = vmatprep.subr.mxu0 0.0
      %734 = vmatpush1.xpose.msra.mxu0 0.0
      %735 = vmatprep.subr.mxu0 0.0
      %736 = vmatpush1.xpose.msra.mxu0 0.0
      %737 = vmatprep.subr.mxu0 0.0
      %738 = vmatpush1.xpose.msra.mxu0 0.0
      %739 = vmatprep.subr.mxu0 0.0
      %740 = vmatpush1.xpose.msra.mxu0 0.0
      %741 = vmatprep.subr.mxu0 0.0
      %742 = vmatpush1.xpose.msra.mxu0 0.0
      %743 = vmatprep.subr.mxu0 0.0
      %744 = vmatpush1.xpose.msra.mxu0 0.0
      %745 = vmatprep.subr.mxu0 0.0
      %746 = vmatpush1.xpose.msra.mxu0 0.0
      %747 = vmatprep.subr.mxu0 0.0
      %748 = vmatpush1.xpose.msra.mxu0 0.0
      %749 = vmatprep.subr.mxu0 0.0
      %750 = vmatpush1.xpose.msra.mxu0 0.0
      %751 = vmatprep.subr.mxu0 0.0
      %752 = vmatpush1.xpose.msra.mxu0 0.0
      %753 = vmatprep.subr.mxu0 0.0
      %754 = vmatpush1.xpose.msra.mxu0 0.0
      %755 = vmatprep.subr.mxu0 0.0
      %756 = vmatpush1.xpose.msra.mxu0 0.0
      %757 = vmatprep.subr.mxu0 0.0
      %758 = vmatpush1.xpose.msra.mxu0 0.0
      %759 = vmatprep.subr.mxu0 0.0
      %760 = vmatpush1.xpose.msra.mxu0 0.0
      %761 = vmatprep.subr.mxu0 0.0
      %762 = vmatpush1.xpose.msra.mxu0 0.0
      %763 = vmatprep.subr.mxu0 0.0
      %764 = vmatpush1.xpose.msra.mxu0 0.0
      %765 = vmatprep.subr.mxu0 0.0
      %766 = vmatpush1.xpose.msra.mxu0 0.0
      %767 = vmatprep.subr.mxu0 0.0
      %768 = vmatpush1.xpose.msra.mxu0 0.0
      %769 = vmatprep.subr.mxu0 0.0
      %770 = vmatpush1.xpose.msra.mxu0 0.0
      %771 = vmatprep.subr.mxu0 0.0
      %772 = vmatpush1.xpose.msra.mxu0 0.0
      %773 = vmatprep.subr.mxu0 0.0
      %774 = vmatpush1.xpose.msra.mxu0 0.0
      %775 = vmatprep.subr.mxu0 0.0
      %776 = vmatpush1.xpose.msra.mxu0 0.0
      %777 = vmatprep.subr.mxu0 0.0
      %778 = vmatpush1.xpose.msra.mxu0 0.0
      %779 = vmatprep.subr.mxu0 0.0
      %780 = vmatpush1.xpose.msra.mxu0 0.0
      %781 = vmatprep.subr.mxu0 0.0
      %782 = vmatpush1.xpose.msra.mxu0 0.0
      %783 = vmatprep.subr.mxu0 0.0
      %784 = vmatpush1.xpose.msra.mxu0 0.0
      %785 = vmatprep.subr.mxu0 0.0
      %786 = vmatpush1.xpose.msra.mxu0 0.0
      %787 = vmatprep.subr.mxu0 0.0
      %788 = vmatpush1.xpose.msra.mxu0 0.0
      %789 = vmatprep.subr.mxu0 0.0
      %790 = vmatpush1.xpose.msra.mxu0 0.0
      %791 = vmatprep.subr.mxu0 0.0
      %792 = vmatpush1.xpose.msra.mxu0 0.0
      %793 = vmatprep.mubr.f32.mxu0 0.0
      %794 = vmatmul.mubr.f32.gmra.mrb[0].mxu0 %v724
      %v795 = vpop.f32.mrb[0].mxu0
      %v796 = vadd.f32 %v54, %v795
      %v797 = vpop.f32.mrb[0].mxu0
      %798 = vdwg.mxu0
      %v799 = vlaneseq
      %v800 = vshrl.u32 %v799, 7
      %v801 = vsub.s32 0, %v800
      %v802 = vrot.slane %v305, %v801
      %803 = vrot.lane.b32.xlu0 %v802, 120
      %v804 = vpop.permute.xlu0 %803
      %v805 = vsel %vm306, %v804, 0
      %v808 = vsel %vm306, %v60, 0
      %810 = vmatprep.subr.mxu0 0.0
      %811 = vmatpush1.xpose.msra.mxu0 %v808
      %812 = vmatprep.subr.mxu0 0.0
      %813 = vmatpush1.xpose.msra.mxu0 0.0
      %814 = vmatprep.subr.mxu0 0.0
      %815 = vmatpush1.xpose.msra.mxu0 0.0
      %816 = vmatprep.subr.mxu0 0.0
      %817 = vmatpush1.xpose.msra.mxu0 0.0
      %818 = vmatprep.subr.mxu0 0.0
      %819 = vmatpush1.xpose.msra.mxu0 0.0
      %820 = vmatprep.subr.mxu0 0.0
      %821 = vmatpush1.xpose.msra.mxu0 0.0
      %822 = vmatprep.subr.mxu0 0.0
      %823 = vmatpush1.xpose.msra.mxu0 0.0
      %824 = vmatprep.subr.mxu0 0.0
      %825 = vmatpush1.xpose.msra.mxu0 0.0
      %826 = vmatprep.subr.mxu0 0.0
      %827 = vmatpush1.xpose.msra.mxu0 0.0
      %828 = vmatprep.subr.mxu0 0.0
      %829 = vmatpush1.xpose.msra.mxu0 0.0
      %830 = vmatprep.subr.mxu0 0.0
      %831 = vmatpush1.xpose.msra.mxu0 0.0
      %832 = vmatprep.subr.mxu0 0.0
      %833 = vmatpush1.xpose.msra.mxu0 0.0
      %834 = vmatprep.subr.mxu0 0.0
      %835 = vmatpush1.xpose.msra.mxu0 0.0
      %836 = vmatprep.subr.mxu0 0.0
      %837 = vmatpush1.xpose.msra.mxu0 0.0
      %838 = vmatprep.subr.mxu0 0.0
      %839 = vmatpush1.xpose.msra.mxu0 0.0
      %840 = vmatprep.subr.mxu0 0.0
      %841 = vmatpush1.xpose.msra.mxu0 0.0
      %842 = vmatprep.subr.mxu0 0.0
      %843 = vmatpush1.xpose.msra.mxu0 0.0
      %844 = vmatprep.subr.mxu0 0.0
      %845 = vmatpush1.xpose.msra.mxu0 0.0
      %846 = vmatprep.subr.mxu0 0.0
      %847 = vmatpush1.xpose.msra.mxu0 0.0
      %848 = vmatprep.subr.mxu0 0.0
      %849 = vmatpush1.xpose.msra.mxu0 0.0
      %850 = vmatprep.subr.mxu0 0.0
      %851 = vmatpush1.xpose.msra.mxu0 0.0
      %852 = vmatprep.subr.mxu0 0.0
      %853 = vmatpush1.xpose.msra.mxu0 0.0
      %854 = vmatprep.subr.mxu0 0.0
      %855 = vmatpush1.xpose.msra.mxu0 0.0
      %856 = vmatprep.subr.mxu0 0.0
      %857 = vmatpush1.xpose.msra.mxu0 0.0
      %858 = vmatprep.subr.mxu0 0.0
      %859 = vmatpush1.xpose.msra.mxu0 0.0
      %860 = vmatprep.subr.mxu0 0.0
      %861 = vmatpush1.xpose.msra.mxu0 0.0
      %862 = vmatprep.subr.mxu0 0.0
      %863 = vmatpush1.xpose.msra.mxu0 0.0
      %864 = vmatprep.subr.mxu0 0.0
      %865 = vmatpush1.xpose.msra.mxu0 0.0
      %866 = vmatprep.subr.mxu0 0.0
      %867 = vmatpush1.xpose.msra.mxu0 0.0
      %868 = vmatprep.subr.mxu0 0.0
      %869 = vmatpush1.xpose.msra.mxu0 0.0
      %870 = vmatprep.subr.mxu0 0.0
      %871 = vmatpush1.xpose.msra.mxu0 0.0
      %872 = vmatprep.subr.mxu0 0.0
      %873 = vmatpush1.xpose.msra.mxu0 0.0
      %874 = vmatprep.mubr.f32.mxu0 0.0
      %875 = vmatmul.mubr.f32.gmra.mrb[0].mxu0 %v805
      %v876 = vpop.f32.mrb[0].mxu0
      %v877 = vadd.f32 %v55, %v876
      %v878 = vpop.f32.mrb[0].mxu0
      %879 = vdwg.mxu0
      %v880 = vsel %vm457, %v796, -inf
      %881 = vmax.xlane.f32.xlu0 %v880
      %v882 = vpop.xlane.xlu0 %881
      %v883 = vsel %vm457, %v877, -inf
      %884 = vmax.xlane.f32.xlu0 %v883
      %v885 = vpop.xlane.xlu0 %884
      %v886 = vsub.f32 %v796, %v882
      %v887 = vsub.f32 %v877, %v885
      %v888 = vmul.f32 %v886, 1.442695
      %v889 = vpow.pop %v888
      %v890 = vmul.f32 %v887, 1.442695
      %v891 = vpow.pop %v890
      %v892 = vsel %vm457, %v889, 0.0
      %893 = vadd.xlane.f32.xlu0 %v892
      %v894 = vpop.xlane.xlu0 %893
      %v895 = vsel %vm457, %v891, 0.0
      %896 = vadd.xlane.f32.xlu0 %v895
      %v897 = vpop.xlane.xlu0 %896
      %v898 = vrcp.pop %v894
      %v899 = vmul.f32 %v889, %v898
      %v900 = vrcp.pop %v897
      %v901 = vmul.f32 %v891, %v900
      %v903 = vsel %vm480, %v899, 0
      %v906 = vsel %vm484, %v70, 0
      %908 = vmatprep.subr.mxu0 0.0
      %909 = vmatpush1.msra.mxu0 %v906
      %910 = vmatprep.subr.mxu0 0.0
      %911 = vmatpush1.msra.mxu0 0.0
      %912 = vmatprep.subr.mxu0 0.0
      %913 = vmatpush1.msra.mxu0 0.0
      %914 = vmatprep.subr.mxu0 0.0
      %915 = vmatpush1.msra.mxu0 0.0
      %916 = vmatprep.subr.mxu0 0.0
      %917 = vmatpush1.msra.mxu0 0.0
      %918 = vmatprep.subr.mxu0 0.0
      %919 = vmatpush1.msra.mxu0 0.0
      %920 = vmatprep.subr.mxu0 0.0
      %921 = vmatpush1.msra.mxu0 0.0
      %922 = vmatprep.subr.mxu0 0.0
      %923 = vmatpush1.msra.mxu0 0.0
      %924 = vmatprep.subr.mxu0 0.0
      %925 = vmatpush1.msra.mxu0 0.0
      %926 = vmatprep.subr.mxu0 0.0
      %927 = vmatpush1.msra.mxu0 0.0
      %928 = vmatprep.subr.mxu0 0.0
      %929 = vmatpush1.msra.mxu0 0.0
      %930 = vmatprep.subr.mxu0 0.0
      %931 = vmatpush1.msra.mxu0 0.0
      %932 = vmatprep.subr.mxu0 0.0
      %933 = vmatpush1.msra.mxu0 0.0
      %934 = vmatprep.subr.mxu0 0.0
      %935 = vmatpush1.msra.mxu0 0.0
      %936 = vmatprep.subr.mxu0 0.0
      %937 = vmatpush1.msra.mxu0 0.0
      %938 = vmatprep.subr.mxu0 0.0
      %939 = vmatpush1.msra.mxu0 0.0
      %940 = vmatprep.subr.mxu0 0.0
      %941 = vmatpush1.msra.mxu0 0.0
      %942 = vmatprep.subr.mxu0 0.0
      %943 = vmatpush1.msra.mxu0 0.0
      %944 = vmatprep.subr.mxu0 0.0
      %945 = vmatpush1.msra.mxu0 0.0
      %946 = vmatprep.subr.mxu0 0.0
      %947 = vmatpush1.msra.mxu0 0.0
      %948 = vmatprep.subr.mxu0 0.0
      %949 = vmatpush1.msra.mxu0 0.0
      %950 = vmatprep.subr.mxu0 0.0
      %951 = vmatpush1.msra.mxu0 0.0
      %952 = vmatprep.subr.mxu0 0.0
      %953 = vmatpush1.msra.mxu0 0.0
      %954 = vmatprep.subr.mxu0 0.0
      %955 = vmatpush1.msra.mxu0 0.0
      %956 = vmatprep.subr.mxu0 0.0
      %957 = vmatpush1.msra.mxu0 0.0
      %958 = vmatprep.subr.mxu0 0.0
      %959 = vmatpush1.msra.mxu0 0.0
      %960 = vmatprep.subr.mxu0 0.0
      %961 = vmatpush1.msra.mxu0 0.0
      %962 = vmatprep.subr.mxu0 0.0
      %963 = vmatpush1.msra.mxu0 0.0
      %964 = vmatprep.subr.mxu0 0.0
      %965 = vmatpush1.msra.mxu0 0.0
      %966 = vmatprep.subr.mxu0 0.0
      %967 = vmatpush1.msra.mxu0 0.0
      %968 = vmatprep.subr.mxu0 0.0
      %969 = vmatpush1.msra.mxu0 0.0
      %970 = vmatprep.subr.mxu0 0.0
      %971 = vmatpush1.msra.mxu0 0.0
      %972 = vmatprep.mubr.f32.mxu0 0.0
      %973 = vmatmul.mubr.f32.gmra.mrb[0].mxu0 %v903
      %v974 = vpop.f32.mrb[0].mxu0
      %v975 = vadd.f32 0.0, %v974
      %v976 = vpop.f32.mrb[0].mxu0
      %977 = vdwg.mxu0
      %v979 = vsel %vm480, %v901, 0
      %v982 = vsel %vm484, %v71, 0
      %984 = vmatprep.subr.mxu0 0.0
      %985 = vmatpush1.msra.mxu0 %v982
      %986 = vmatprep.subr.mxu0 0.0
      %987 = vmatpush1.msra.mxu0 0.0
      %988 = vmatprep.subr.mxu0 0.0
      %989 = vmatpush1.msra.mxu0 0.0
      %990 = vmatprep.subr.mxu0 0.0
      %991 = vmatpush1.msra.mxu0 0.0
      %992 = vmatprep.subr.mxu0 0.0
      %993 = vmatpush1.msra.mxu0 0.0
      %994 = vmatprep.subr.mxu0 0.0
      %995 = vmatpush1.msra.mxu0 0.0
      %996 = vmatprep.subr.mxu0 0.0
      %997 = vmatpush1.msra.mxu0 0.0
      %998 = vmatprep.subr.mxu0 0.0
      %999 = vmatpush1.msra.mxu0 0.0
      %1000 = vmatprep.subr.mxu0 0.0
      %1001 = vmatpush1.msra.mxu0 0.0
      %1002 = vmatprep.subr.mxu0 0.0
      %1003 = vmatpush1.msra.mxu0 0.0
      %1004 = vmatprep.subr.mxu0 0.0
      %1005 = vmatpush1.msra.mxu0 0.0
      %1006 = vmatprep.subr.mxu0 0.0
      %1007 = vmatpush1.msra.mxu0 0.0
      %1008 = vmatprep.subr.mxu0 0.0
      %1009 = vmatpush1.msra.mxu0 0.0
      %1010 = vmatprep.subr.mxu0 0.0
      %1011 = vmatpush1.msra.mxu0 0.0
      %1012 = vmatprep.subr.mxu0 0.0
      %1013 = vmatpush1.msra.mxu0 0.0
      %1014 = vmatprep.subr.mxu0 0.0
      %1015 = vmatpush1.msra.mxu0 0.0
      %1016 = vmatprep.subr.mxu0 0.0
      %1017 = vmatpush1.msra.mxu0 0.0
      %1018 = vmatprep.subr.mxu0 0.0
      %1019 = vmatpush1.msra.mxu0 0.0
      %1020 = vmatprep.subr.mxu0 0.0
      %1021 = vmatpush1.msra.mxu0 0.0
      %1022 = vmatprep.subr.mxu0 0.0
      %1023 = vmatpush1.msra.mxu0 0.0
      %1024 = vmatprep.subr.mxu0 0.0
      %1025 = vmatpush1.msra.mxu0 0.0
      %1026 = vmatprep.subr.mxu0 0.0
      %1027 = vmatpush1.msra.mxu0 0.0
      %1028 = vmatprep.subr.mxu0 0.0
      %1029 = vmatpush1.msra.mxu0 0.0
      %1030 = vmatprep.subr.mxu0 0.0
      %1031 = vmatpush1.msra.mxu0 0.0
      %1032 = vmatprep.subr.mxu0 0.0
      %1033 = vmatpush1.msra.mxu0 0.0
      %1034 = vmatprep.subr.mxu0 0.0
      %1035 = vmatpush1.msra.mxu0 0.0
      %1036 = vmatprep.subr.mxu0 0.0
      %1037 = vmatpush1.msra.mxu0 0.0
      %1038 = vmatprep.subr.mxu0 0.0
      %1039 = vmatpush1.msra.mxu0 0.0
      %1040 = vmatprep.subr.mxu0 0.0
      %1041 = vmatpush1.msra.mxu0 0.0
      %1042 = vmatprep.subr.mxu0 0.0
      %1043 = vmatpush1.msra.mxu0 0.0
      %1044 = vmatprep.subr.mxu0 0.0
      %1045 = vmatpush1.msra.mxu0 0.0
      %1046 = vmatprep.subr.mxu0 0.0
      %1047 = vmatpush1.msra.mxu0 0.0
      %1048 = vmatprep.mubr.f32.mxu0 0.0
      %1049 = vmatmul.mubr.f32.gmra.mrb[0].mxu0 %v979
      %v1050 = vpop.f32.mrb[0].mxu0
      %v1051 = vadd.f32 0.0, %v1050
      %v1052 = vpop.f32.mrb[0].mxu0
      %1053 = vdwg.mxu0
      %v1056 = vrot.slane %v1051, 7
      %v1057 = vsel %vm637, %v1056, %v975
      %v1058 = vsel %vm306, %v1057, 0
      %1060 = vmatprep.subr.mxu0 0.0
      %1061 = vmatpush1.msra.mxu0 %v50
      %1062 = vmatprep.subr.mxu0 0.0
      %1063 = vmatpush1.msra.mxu0 0.0
      %1064 = vmatprep.subr.mxu0 0.0
      %1065 = vmatpush1.msra.mxu0 0.0
      %1066 = vmatprep.subr.mxu0 0.0
      %1067 = vmatpush1.msra.mxu0 0.0
      %1068 = vmatprep.subr.mxu0 0.0
      %1069 = vmatpush1.msra.mxu0 0.0
      %1070 = vmatprep.subr.mxu0 0.0
      %1071 = vmatpush1.msra.mxu0 0.0
      %1072 = vmatprep.subr.mxu0 0.0
      %1073 = vmatpush1.msra.mxu0 0.0
      %1074 = vmatprep.subr.mxu0 0.0
      %1075 = vmatpush1.msra.mxu0 0.0
      %1076 = vmatprep.subr.mxu0 0.0
      %1077 = vmatpush1.msra.mxu0 0.0
      %1078 = vmatprep.subr.mxu0 0.0
      %1079 = vmatpush1.msra.mxu0 0.0
      %1080 = vmatprep.subr.mxu0 0.0
      %1081 = vmatpush1.msra.mxu0 0.0
      %1082 = vmatprep.subr.mxu0 0.0
      %1083 = vmatpush1.msra.mxu0 0.0
      %1084 = vmatprep.subr.mxu0 0.0
      %1085 = vmatpush1.msra.mxu0 0.0
      %1086 = vmatprep.subr.mxu0 0.0
      %1087 = vmatpush1.msra.mxu0 0.0
      %1088 = vmatprep.subr.mxu0 0.0
      %1089 = vmatpush1.msra.mxu0 0.0
      %1090 = vmatprep.subr.mxu0 0.0
      %1091 = vmatpush1.msra.mxu0 0.0
      %1092 = vmatprep.subr.mxu0 0.0
      %1093 = vmatpush1.msra.mxu0 0.0
      %1094 = vmatprep.subr.mxu0 0.0
      %1095 = vmatpush1.msra.mxu0 0.0
      %1096 = vmatprep.subr.mxu0 0.0
      %1097 = vmatpush1.msra.mxu0 0.0
      %1098 = vmatprep.subr.mxu0 0.0
      %1099 = vmatpush1.msra.mxu0 0.0
      %1100 = vmatprep.subr.mxu0 0.0
      %1101 = vmatpush1.msra.mxu0 0.0
      %1102 = vmatprep.subr.mxu0 0.0
      %1103 = vmatpush1.msra.mxu0 0.0
      %1104 = vmatprep.subr.mxu0 0.0
      %1105 = vmatpush1.msra.mxu0 0.0
      %1106 = vmatprep.subr.mxu0 0.0
      %1107 = vmatpush1.msra.mxu0 0.0
      %1108 = vmatprep.subr.mxu0 0.0
      %1109 = vmatpush1.msra.mxu0 0.0
      %1110 = vmatprep.subr.mxu0 0.0
      %1111 = vmatpush1.msra.mxu0 0.0
      %1112 = vmatprep.subr.mxu0 0.0
      %1113 = vmatpush1.msra.mxu0 0.0
      %1114 = vmatprep.subr.mxu0 0.0
      %1115 = vmatpush1.msra.mxu0 0.0
      %1116 = vmatprep.subr.mxu0 0.0
      %1117 = vmatpush1.msra.mxu0 0.0
      %1118 = vmatprep.subr.mxu0 0.0
      %1119 = vmatpush1.msra.mxu0 0.0
      %1120 = vmatprep.subr.mxu0 0.0
      %1121 = vmatpush1.msra.mxu0 0.0
      %1122 = vmatprep.subr.mxu0 0.0
      %1123 = vmatpush1.msra.mxu0 0.0
      %1124 = vmatprep.mubr.f32.mxu0 0.0
      %1125 = vmatmul.mubr.f32.gmra.mrb[0].mxu0 %v1058
      %v1126 = vpop.f32.mrb[0].mxu0
      %v1127 = vadd.f32 0.0, %v1126
      %v1128 = vpop.f32.mrb[0].mxu0
      %1129 = vdwg.mxu0
      %v1130 = vadd.f32 %v717, %v1127
      %1131 = vrot.lane.b32.xlu0 %v721, 112
      %v1132 = vpop.permute.xlu0 %1131
      %v1133 = vsel %vm306, %v1132, 0
      %v1136 = vsel %vm306, %v62, 0
      %1138 = vmatprep.subr.mxu0 0.0
      %1139 = vmatpush1.xpose.msra.mxu0 %v1136
      %1140 = vmatprep.subr.mxu0 0.0
      %1141 = vmatpush1.xpose.msra.mxu0 0.0
      %1142 = vmatprep.subr.mxu0 0.0
      %1143 = vmatpush1.xpose.msra.mxu0 0.0
      %1144 = vmatprep.subr.mxu0 0.0
      %1145 = vmatpush1.xpose.msra.mxu0 0.0
      %1146 = vmatprep.subr.mxu0 0.0
      %1147 = vmatpush1.xpose.msra.mxu0 0.0
      %1148 = vmatprep.subr.mxu0 0.0
      %1149 = vmatpush1.xpose.msra.mxu0 0.0
      %1150 = vmatprep.subr.mxu0 0.0
      %1151 = vmatpush1.xpose.msra.mxu0 0.0
      %1152 = vmatprep.subr.mxu0 0.0
      %1153 = vmatpush1.xpose.msra.mxu0 0.0
      %1154 = vmatprep.subr.mxu0 0.0
      %1155 = vmatpush1.xpose.msra.mxu0 0.0
      %1156 = vmatprep.subr.mxu0 0.0
      %1157 = vmatpush1.xpose.msra.mxu0 0.0
      %1158 = vmatprep.subr.mxu0 0.0
      %1159 = vmatpush1.xpose.msra.mxu0 0.0
      %1160 = vmatprep.subr.mxu0 0.0
      %1161 = vmatpush1.xpose.msra.mxu0 0.0
      %1162 = vmatprep.subr.mxu0 0.0
      %1163 = vmatpush1.xpose.msra.mxu0 0.0
      %1164 = vmatprep.subr.mxu0 0.0
      %1165 = vmatpush1.xpose.msra.mxu0 0.0
      %1166 = vmatprep.subr.mxu0 0.0
      %1167 = vmatpush1.xpose.msra.mxu0 0.0
      %1168 = vmatprep.subr.mxu0 0.0
      %1169 = vmatpush1.xpose.msra.mxu0 0.0
      %1170 = vmatprep.subr.mxu0 0.0
      %1171 = vmatpush1.xpose.msra.mxu0 0.0
      %1172 = vmatprep.subr.mxu0 0.0
      %1173 = vmatpush1.xpose.msra.mxu0 0.0
      %1174 = vmatprep.subr.mxu0 0.0
      %1175 = vmatpush1.xpose.msra.mxu0 0.0
      %1176 = vmatprep.subr.mxu0 0.0
      %1177 = vmatpush1.xpose.msra.mxu0 0.0
      %1178 = vmatprep.subr.mxu0 0.0
      %1179 = vmatpush1.xpose.msra.mxu0 0.0
      %1180 = vmatprep.subr.mxu0 0.0
      %1181 = vmatpush1.xpose.msra.mxu0 0.0
      %1182 = vmatprep.subr.mxu0 0.0
      %1183 = vmatpush1.xpose.msra.mxu0 0.0
      %1184 = vmatprep.subr.mxu0 0.0
      %1185 = vmatpush1.xpose.msra.mxu0 0.0
      %1186 = vmatprep.subr.mxu0 0.0
      %1187 = vmatpush1.xpose.msra.mxu0 0.0
      %1188 = vmatprep.subr.mxu0 0.0
      %1189 = vmatpush1.xpose.msra.mxu0 0.0
      %1190 = vmatprep.subr.mxu0 0.0
      %1191 = vmatpush1.xpose.msra.mxu0 0.0
      %1192 = vmatprep.subr.mxu0 0.0
      %1193 = vmatpush1.xpose.msra.mxu0 0.0
      %1194 = vmatprep.subr.mxu0 0.0
      %1195 = vmatpush1.xpose.msra.mxu0 0.0
      %1196 = vmatprep.subr.mxu0 0.0
      %1197 = vmatpush1.xpose.msra.mxu0 0.0
      %1198 = vmatprep.subr.mxu0 0.0
      %1199 = vmatpush1.xpose.msra.mxu0 0.0
      %1200 = vmatprep.subr.mxu0 0.0
      %1201 = vmatpush1.xpose.msra.mxu0 0.0
      %1202 = vmatprep.mubr.f32.mxu0 0.0
      %1203 = vmatmul.mubr.f32.gmra.mrb[0].mxu0 %v1133
      %v1204 = vpop.f32.mrb[0].mxu0
      %v1205 = vadd.f32 %v54, %v1204
      %v1206 = vpop.f32.mrb[0].mxu0
      %1207 = vdwg.mxu0
      %1208 = vrot.lane.b32.xlu0 %v802, 112
      %v1209 = vpop.permute.xlu0 %1208
      %v1210 = vsel %vm306, %v1209, 0
      %v1213 = vsel %vm306, %v63, 0
      %1215 = vmatprep.subr.mxu0 0.0
      %1216 = vmatpush1.xpose.msra.mxu0 %v1213
      %1217 = vmatprep.subr.mxu0 0.0
      %1218 = vmatpush1.xpose.msra.mxu0 0.0
      %1219 = vmatprep.subr.mxu0 0.0
      %1220 = vmatpush1.xpose.msra.mxu0 0.0
      %1221 = vmatprep.subr.mxu0 0.0
      %1222 = vmatpush1.xpose.msra.mxu0 0.0
      %1223 = vmatprep.subr.mxu0 0.0
      %1224 = vmatpush1.xpose.msra.mxu0 0.0
      %1225 = vmatprep.subr.mxu0 0.0
      %1226 = vmatpush1.xpose.msra.mxu0 0.0
      %1227 = vmatprep.subr.mxu0 0.0
      %1228 = vmatpush1.xpose.msra.mxu0 0.0
      %1229 = vmatprep.subr.mxu0 0.0
      %1230 = vmatpush1.xpose.msra.mxu0 0.0
      %1231 = vmatprep.subr.mxu0 0.0
      %1232 = vmatpush1.xpose.msra.mxu0 0.0
      %1233 = vmatprep.subr.mxu0 0.0
      %1234 = vmatpush1.xpose.msra.mxu0 0.0
      %1235 = vmatprep.subr.mxu0 0.0
      %1236 = vmatpush1.xpose.msra.mxu0 0.0
      %1237 = vmatprep.subr.mxu0 0.0
      %1238 = vmatpush1.xpose.msra.mxu0 0.0
      %1239 = vmatprep.subr.mxu0 0.0
      %1240 = vmatpush1.xpose.msra.mxu0 0.0
      %1241 = vmatprep.subr.mxu0 0.0
      %1242 = vmatpush1.xpose.msra.mxu0 0.0
      %1243 = vmatprep.subr.mxu0 0.0
      %1244 = vmatpush1.xpose.msra.mxu0 0.0
      %1245 = vmatprep.subr.mxu0 0.0
      %1246 = vmatpush1.xpose.msra.mxu0 0.0
      %1247 = vmatprep.subr.mxu0 0.0
      %1248 = vmatpush1.xpose.msra.mxu0 0.0
      %1249 = vmatprep.subr.mxu0 0.0
      %1250 = vmatpush1.xpose.msra.mxu0 0.0
      %1251 = vmatprep.subr.mxu0 0.0
      %1252 = vmatpush1.xpose.msra.mxu0 0.0
      %1253 = vmatprep.subr.mxu0 0.0
      %1254 = vmatpush1.xpose.msra.mxu0 0.0
      %1255 = vmatprep.subr.mxu0 0.0
      %1256 = vmatpush1.xpose.msra.mxu0 0.0
      %1257 = vmatprep.subr.mxu0 0.0
      %1258 = vmatpush1.xpose.msra.mxu0 0.0
      %1259 = vmatprep.subr.mxu0 0.0
      %1260 = vmatpush1.xpose.msra.mxu0 0.0
      %1261 = vmatprep.subr.mxu0 0.0
      %1262 = vmatpush1.xpose.msra.mxu0 0.0
      %1263 = vmatprep.subr.mxu0 0.0
      %1264 = vmatpush1.xpose.msra.mxu0 0.0
      %1265 = vmatprep.subr.mxu0 0.0
      %1266 = vmatpush1.xpose.msra.mxu0 0.0
      %1267 = vmatprep.subr.mxu0 0.0
      %1268 = vmatpush1.xpose.msra.mxu0 0.0
      %1269 = vmatprep.subr.mxu0 0.0
      %1270 = vmatpush1.xpose.msra.mxu0 0.0
      %1271 = vmatprep.subr.mxu0 0.0
      %1272 = vmatpush1.xpose.msra.mxu0 0.0
      %1273 = vmatprep.subr.mxu0 0.0
      %1274 = vmatpush1.xpose.msra.mxu0 0.0
      %1275 = vmatprep.subr.mxu0 0.0
      %1276 = vmatpush1.xpose.msra.mxu0 0.0
      %1277 = vmatprep.subr.mxu0 0.0
      %1278 = vmatpush1.xpose.msra.mxu0 0.0
      %1279 = vmatprep.mubr.f32.mxu0 0.0
      %1280 = vmatmul.mubr.f32.gmra.mrb[0].mxu0 %v1210
      %v1281 = vpop.f32.mrb[0].mxu0
      %v1282 = vadd.f32 %v55, %v1281
      %v1283 = vpop.f32.mrb[0].mxu0
      %1284 = vdwg.mxu0
      %v1285 = vsel %vm457, %v1205, -inf
      %1286 = vmax.xlane.f32.xlu0 %v1285
      %v1287 = vpop.xlane.xlu0 %1286
      %v1288 = vsel %vm457, %v1282, -inf
      %1289 = vmax.xlane.f32.xlu0 %v1288
      %v1290 = vpop.xlane.xlu0 %1289
      %v1291 = vsub.f32 %v1205, %v1287
      %v1292 = vsub.f32 %v1282, %v1290
      %v1293 = vmul.f32 %v1291, 1.442695
      %v1294 = vpow.pop %v1293
      %v1295 = vmul.f32 %v1292, 1.442695
      %v1296 = vpow.pop %v1295
      %v1297 = vsel %vm457, %v1294, 0.0
      %1298 = vadd.xlane.f32.xlu0 %v1297
      %v1299 = vpop.xlane.xlu0 %1298
      %v1300 = vsel %vm457, %v1296, 0.0
      %1301 = vadd.xlane.f32.xlu0 %v1300
      %v1302 = vpop.xlane.xlu0 %1301
      %v1303 = vrcp.pop %v1299
      %v1304 = vmul.f32 %v1294, %v1303
      %v1305 = vrcp.pop %v1302
      %v1306 = vmul.f32 %v1296, %v1305
      %v1308 = vsel %vm480, %v1304, 0
      %v1311 = vsel %vm484, %v73, 0
      %1313 = vmatprep.subr.mxu0 0.0
      %1314 = vmatpush1.msra.mxu0 %v1311
      %1315 = vmatprep.subr.mxu0 0.0
      %1316 = vmatpush1.msra.mxu0 0.0
      %1317 = vmatprep.subr.mxu0 0.0
      %1318 = vmatpush1.msra.mxu0 0.0
      %1319 = vmatprep.subr.mxu0 0.0
      %1320 = vmatpush1.msra.mxu0 0.0
      %1321 = vmatprep.subr.mxu0 0.0
      %1322 = vmatpush1.msra.mxu0 0.0
      %1323 = vmatprep.subr.mxu0 0.0
      %1324 = vmatpush1.msra.mxu0 0.0
      %1325 = vmatprep.subr.mxu0 0.0
      %1326 = vmatpush1.msra.mxu0 0.0
      %1327 = vmatprep.subr.mxu0 0.0
      %1328 = vmatpush1.msra.mxu0 0.0
      %1329 = vmatprep.subr.mxu0 0.0
      %1330 = vmatpush1.msra.mxu0 0.0
      %1331 = vmatprep.subr.mxu0 0.0
      %1332 = vmatpush1.msra.mxu0 0.0
      %1333 = vmatprep.subr.mxu0 0.0
      %1334 = vmatpush1.msra.mxu0 0.0
      %1335 = vmatprep.subr.mxu0 0.0
      %1336 = vmatpush1.msra.mxu0 0.0
      %1337 = vmatprep.subr.mxu0 0.0
      %1338 = vmatpush1.msra.mxu0 0.0
      %1339 = vmatprep.subr.mxu0 0.0
      %1340 = vmatpush1.msra.mxu0 0.0
      %1341 = vmatprep.subr.mxu0 0.0
      %1342 = vmatpush1.msra.mxu0 0.0
      %1343 = vmatprep.subr.mxu0 0.0
      %1344 = vmatpush1.msra.mxu0 0.0
      %1345 = vmatprep.subr.mxu0 0.0
      %1346 = vmatpush1.msra.mxu0 0.0
      %1347 = vmatprep.subr.mxu0 0.0
      %1348 = vmatpush1.msra.mxu0 0.0
      %1349 = vmatprep.subr.mxu0 0.0
      %1350 = vmatpush1.msra.mxu0 0.0
      %1351 = vmatprep.subr.mxu0 0.0
      %1352 = vmatpush1.msra.mxu0 0.0
      %1353 = vmatprep.subr.mxu0 0.0
      %1354 = vmatpush1.msra.mxu0 0.0
      %1355 = vmatprep.subr.mxu0 0.0
      %1356 = vmatpush1.msra.mxu0 0.0
      %1357 = vmatprep.subr.mxu0 0.0
      %1358 = vmatpush1.msra.mxu0 0.0
      %1359 = vmatprep.subr.mxu0 0.0
      %1360 = vmatpush1.msra.mxu0 0.0
      %1361 = vmatprep.subr.mxu0 0.0
      %1362 = vmatpush1.msra.mxu0 0.0
      %1363 = vmatprep.subr.mxu0 0.0
      %1364 = vmatpush1.msra.mxu0 0.0
      %1365 = vmatprep.subr.mxu0 0.0
      %1366 = vmatpush1.msra.mxu0 0.0
      %1367 = vmatprep.subr.mxu0 0.0
      %1368 = vmatpush1.msra.mxu0 0.0
      %1369 = vmatprep.subr.mxu0 0.0
      %1370 = vmatpush1.msra.mxu0 0.0
      %1371 = vmatprep.subr.mxu0 0.0
      %1372 = vmatpush1.msra.mxu0 0.0
      %1373 = vmatprep.subr.mxu0 0.0
      %1374 = vmatpush1.msra.mxu0 0.0
      %1375 = vmatprep.subr.mxu0 0.0
      %1376 = vmatpush1.msra.mxu0 0.0
      %1377 = vmatprep.mubr.f32.mxu0 0.0
      %1378 = vmatmul.mubr.f32.gmra.mrb[0].mxu0 %v1308
      %v1379 = vpop.f32.mrb[0].mxu0
      %v1380 = vadd.f32 0.0, %v1379
      %v1381 = vpop.f32.mrb[0].mxu0
      %1382 = vdwg.mxu0
      %v1384 = vsel %vm480, %v1306, 0
      %v1387 = vsel %vm484, %v74, 0
      %1389 = vmatprep.subr.mxu0 0.0
      %1390 = vmatpush1.msra.mxu0 %v1387
      %1391 = vmatprep.subr.mxu0 0.0
      %1392 = vmatpush1.msra.mxu0 0.0
      %1393 = vmatprep.subr.mxu0 0.0
      %1394 = vmatpush1.msra.mxu0 0.0
      %1395 = vmatprep.subr.mxu0 0.0
      %1396 = vmatpush1.msra.mxu0 0.0
      %1397 = vmatprep.subr.mxu0 0.0
      %1398 = vmatpush1.msra.mxu0 0.0
      %1399 = vmatprep.subr.mxu0 0.0
      %1400 = vmatpush1.msra.mxu0 0.0
      %1401 = vmatprep.subr.mxu0 0.0
      %1402 = vmatpush1.msra.mxu0 0.0
      %1403 = vmatprep.subr.mxu0 0.0
      %1404 = vmatpush1.msra.mxu0 0.0
      %1405 = vmatprep.subr.mxu0 0.0
      %1406 = vmatpush1.msra.mxu0 0.0
      %1407 = vmatprep.subr.mxu0 0.0
      %1408 = vmatpush1.msra.mxu0 0.0
      %1409 = vmatprep.subr.mxu0 0.0
      %1410 = vmatpush1.msra.mxu0 0.0
      %1411 = vmatprep.subr.mxu0 0.0
      %1412 = vmatpush1.msra.mxu0 0.0
      %1413 = vmatprep.subr.mxu0 0.0
      %1414 = vmatpush1.msra.mxu0 0.0
      %1415 = vmatprep.subr.mxu0 0.0
      %1416 = vmatpush1.msra.mxu0 0.0
      %1417 = vmatprep.subr.mxu0 0.0
      %1418 = vmatpush1.msra.mxu0 0.0
      %1419 = vmatprep.subr.mxu0 0.0
      %1420 = vmatpush1.msra.mxu0 0.0
      %1421 = vmatprep.subr.mxu0 0.0
      %1422 = vmatpush1.msra.mxu0 0.0
      %1423 = vmatprep.subr.mxu0 0.0
      %1424 = vmatpush1.msra.mxu0 0.0
      %1425 = vmatprep.subr.mxu0 0.0
      %1426 = vmatpush1.msra.mxu0 0.0
      %1427 = vmatprep.subr.mxu0 0.0
      %1428 = vmatpush1.msra.mxu0 0.0
      %1429 = vmatprep.subr.mxu0 0.0
      %1430 = vmatpush1.msra.mxu0 0.0
      %1431 = vmatprep.subr.mxu0 0.0
      %1432 = vmatpush1.msra.mxu0 0.0
      %1433 = vmatprep.subr.mxu0 0.0
      %1434 = vmatpush1.msra.mxu0 0.0
      %1435 = vmatprep.subr.mxu0 0.0
      %1436 = vmatpush1.msra.mxu0 0.0
      %1437 = vmatprep.subr.mxu0 0.0
      %1438 = vmatpush1.msra.mxu0 0.0
      %1439 = vmatprep.subr.mxu0 0.0
      %1440 = vmatpush1.msra.mxu0 0.0
      %1441 = vmatprep.subr.mxu0 0.0
      %1442 = vmatpush1.msra.mxu0 0.0
      %1443 = vmatprep.subr.mxu0 0.0
      %1444 = vmatpush1.msra.mxu0 0.0
      %1445 = vmatprep.subr.mxu0 0.0
      %1446 = vmatpush1.msra.mxu0 0.0
      %1447 = vmatprep.subr.mxu0 0.0
      %1448 = vmatpush1.msra.mxu0 0.0
      %1449 = vmatprep.subr.mxu0 0.0
      %1450 = vmatpush1.msra.mxu0 0.0
      %1451 = vmatprep.subr.mxu0 0.0
      %1452 = vmatpush1.msra.mxu0 0.0
      %1453 = vmatprep.mubr.f32.mxu0 0.0
      %1454 = vmatmul.mubr.f32.gmra.mrb[0].mxu0 %v1384
      %v1455 = vpop.f32.mrb[0].mxu0
      %v1456 = vadd.f32 0.0, %v1455
      %v1457 = vpop.f32.mrb[0].mxu0
      %1458 = vdwg.mxu0
      %v1461 = vrot.slane %v1456, 7
      %v1462 = vsel %vm637, %v1461, %v1380
      %v1463 = vsel %vm306, %v1462, 0
      %1465 = vmatprep.subr.mxu0 0.0
      %1466 = vmatpush1.msra.mxu0 %v51
      %1467 = vmatprep.subr.mxu0 0.0
      %1468 = vmatpush1.msra.mxu0 0.0
      %1469 = vmatprep.subr.mxu0 0.0
      %1470 = vmatpush1.msra.mxu0 0.0
      %1471 = vmatprep.subr.mxu0 0.0
      %1472 = vmatpush1.msra.mxu0 0.0
      %1473 = vmatprep.subr.mxu0 0.0
      %1474 = vmatpush1.msra.mxu0 0.0
      %1475 = vmatprep.subr.mxu0 0.0
      %1476 = vmatpush1.msra.mxu0 0.0
      %1477 = vmatprep.subr.mxu0 0.0
      %1478 = vmatpush1.msra.mxu0 0.0
      %1479 = vmatprep.subr.mxu0 0.0
      %1480 = vmatpush1.msra.mxu0 0.0
      %1481 = vmatprep.subr.mxu0 0.0
      %1482 = vmatpush1.msra.mxu0 0.0
      %1483 = vmatprep.subr.mxu0 0.0
      %1484 = vmatpush1.msra.mxu0 0.0
      %1485 = vmatprep.subr.mxu0 0.0
      %1486 = vmatpush1.msra.mxu0 0.0
      %1487 = vmatprep.subr.mxu0 0.0
      %1488 = vmatpush1.msra.mxu0 0.0
      %1489 = vmatprep.subr.mxu0 0.0
      %1490 = vmatpush1.msra.mxu0 0.0
      %1491 = vmatprep.subr.mxu0 0.0
      %1492 = vmatpush1.msra.mxu0 0.0
      %1493 = vmatprep.subr.mxu0 0.0
      %1494 = vmatpush1.msra.mxu0 0.0
      %1495 = vmatprep.subr.mxu0 0.0
      %1496 = vmatpush1.msra.mxu0 0.0
      %1497 = vmatprep.subr.mxu0 0.0
      %1498 = vmatpush1.msra.mxu0 0.0
      %1499 = vmatprep.subr.mxu0 0.0
      %1500 = vmatpush1.msra.mxu0 0.0
      %1501 = vmatprep.subr.mxu0 0.0
      %1502 = vmatpush1.msra.mxu0 0.0
      %1503 = vmatprep.subr.mxu0 0.0
      %1504 = vmatpush1.msra.mxu0 0.0
      %1505 = vmatprep.subr.mxu0 0.0
      %1506 = vmatpush1.msra.mxu0 0.0
      %1507 = vmatprep.subr.mxu0 0.0
      %1508 = vmatpush1.msra.mxu0 0.0
      %1509 = vmatprep.subr.mxu0 0.0
      %1510 = vmatpush1.msra.mxu0 0.0
      %1511 = vmatprep.subr.mxu0 0.0
      %1512 = vmatpush1.msra.mxu0 0.0
      %1513 = vmatprep.subr.mxu0 0.0
      %1514 = vmatpush1.msra.mxu0 0.0
      %1515 = vmatprep.subr.mxu0 0.0
      %1516 = vmatpush1.msra.mxu0 0.0
      %1517 = vmatprep.subr.mxu0 0.0
      %1518 = vmatpush1.msra.mxu0 0.0
      %1519 = vmatprep.subr.mxu0 0.0
      %1520 = vmatpush1.msra.mxu0 0.0
      %1521 = vmatprep.subr.mxu0 0.0
      %1522 = vmatpush1.msra.mxu0 0.0
      %1523 = vmatprep.subr.mxu0 0.0
      %1524 = vmatpush1.msra.mxu0 0.0
      %1525 = vmatprep.subr.mxu0 0.0
      %1526 = vmatpush1.msra.mxu0 0.0
      %1527 = vmatprep.subr.mxu0 0.0
      %1528 = vmatpush1.msra.mxu0 0.0
      %1529 = vmatprep.mubr.f32.mxu0 0.0
      %1530 = vmatmul.mubr.f32.gmra.mrb[0].mxu0 %v1463
      %v1531 = vpop.f32.mrb[0].mxu0
      %v1532 = vadd.f32 0.0, %v1531
      %v1533 = vpop.f32.mrb[0].mxu0
      %1534 = vdwg.mxu0
      %v1535 = vadd.f32 %v1130, %v1532
      %1536 = vrot.lane.b32.xlu0 %v721, 104
      %v1537 = vpop.permute.xlu0 %1536
      %v1538 = vsel %vm306, %v1537, 0
      %v1541 = vsel %vm306, %v65, 0
      %1543 = vmatprep.subr.mxu0 0.0
      %1544 = vmatpush1.xpose.msra.mxu0 %v1541
      %1545 = vmatprep.subr.mxu0 0.0
      %1546 = vmatpush1.xpose.msra.mxu0 0.0
      %1547 = vmatprep.subr.mxu0 0.0
      %1548 = vmatpush1.xpose.msra.mxu0 0.0
      %1549 = vmatprep.subr.mxu0 0.0
      %1550 = vmatpush1.xpose.msra.mxu0 0.0
      %1551 = vmatprep.subr.mxu0 0.0
      %1552 = vmatpush1.xpose.msra.mxu0 0.0
      %1553 = vmatprep.subr.mxu0 0.0
      %1554 = vmatpush1.xpose.msra.mxu0 0.0
      %1555 = vmatprep.subr.mxu0 0.0
      %1556 = vmatpush1.xpose.msra.mxu0 0.0
      %1557 = vmatprep.subr.mxu0 0.0
      %1558 = vmatpush1.xpose.msra.mxu0 0.0
      %1559 = vmatprep.subr.mxu0 0.0
      %1560 = vmatpush1.xpose.msra.mxu0 0.0
      %1561 = vmatprep.subr.mxu0 0.0
      %1562 = vmatpush1.xpose.msra.mxu0 0.0
      %1563 = vmatprep.subr.mxu0 0.0
      %1564 = vmatpush1.xpose.msra.mxu0 0.0
      %1565 = vmatprep.subr.mxu0 0.0
      %1566 = vmatpush1.xpose.msra.mxu0 0.0
      %1567 = vmatprep.subr.mxu0 0.0
      %1568 = vmatpush1.xpose.msra.mxu0 0.0
      %1569 = vmatprep.subr.mxu0 0.0
      %1570 = vmatpush1.xpose.msra.mxu0 0.0
      %1571 = vmatprep.subr.mxu0 0.0
      %1572 = vmatpush1.xpose.msra.mxu0 0.0
      %1573 = vmatprep.subr.mxu0 0.0
      %1574 = vmatpush1.xpose.msra.mxu0 0.0
      %1575 = vmatprep.subr.mxu0 0.0
      %1576 = vmatpush1.xpose.msra.mxu0 0.0
      %1577 = vmatprep.subr.mxu0 0.0
      %1578 = vmatpush1.xpose.msra.mxu0 0.0
      %1579 = vmatprep.subr.mxu0 0.0
      %1580 = vmatpush1.xpose.msra.mxu0 0.0
      %1581 = vmatprep.subr.mxu0 0.0
      %1582 = vmatpush1.xpose.msra.mxu0 0.0
      %1583 = vmatprep.subr.mxu0 0.0
      %1584 = vmatpush1.xpose.msra.mxu0 0.0
      %1585 = vmatprep.subr.mxu0 0.0
      %1586 = vmatpush1.xpose.msra.mxu0 0.0
      %1587 = vmatprep.subr.mxu0 0.0
      %1588 = vmatpush1.xpose.msra.mxu0 0.0
      %1589 = vmatprep.subr.mxu0 0.0
      %1590 = vmatpush1.xpose.msra.mxu0 0.0
      %1591 = vmatprep.subr.mxu0 0.0
      %1592 = vmatpush1.xpose.msra.mxu0 0.0
      %1593 = vmatprep.subr.mxu0 0.0
      %1594 = vmatpush1.xpose.msra.mxu0 0.0
      %1595 = vmatprep.subr.mxu0 0.0
      %1596 = vmatpush1.xpose.msra.mxu0 0.0
      %1597 = vmatprep.subr.mxu0 0.0
      %1598 = vmatpush1.xpose.msra.mxu0 0.0
      %1599 = vmatprep.subr.mxu0 0.0
      %1600 = vmatpush1.xpose.msra.mxu0 0.0
      %1601 = vmatprep.subr.mxu0 0.0
      %1602 = vmatpush1.xpose.msra.mxu0 0.0
      %1603 = vmatprep.subr.mxu0 0.0
      %1604 = vmatpush1.xpose.msra.mxu0 0.0
      %1605 = vmatprep.subr.mxu0 0.0
      %1606 = vmatpush1.xpose.msra.mxu0 0.0
      %1607 = vmatprep.mubr.f32.mxu0 0.0
      %1608 = vmatmul.mubr.f32.gmra.mrb[0].mxu0 %v1538
      %v1609 = vpop.f32.mrb[0].mxu0
      %v1610 = vadd.f32 %v54, %v1609
      %v1611 = vpop.f32.mrb[0].mxu0
      %1612 = vdwg.mxu0
      %1613 = vrot.lane.b32.xlu0 %v802, 104
      %v1614 = vpop.permute.xlu0 %1613
      %v1615 = vsel %vm306, %v1614, 0
      %v1618 = vsel %vm306, %v66, 0
      %1620 = vmatprep.subr.mxu0 0.0
      %1621 = vmatpush1.xpose.msra.mxu0 %v1618
      %1622 = vmatprep.subr.mxu0 0.0
      %1623 = vmatpush1.xpose.msra.mxu0 0.0
      %1624 = vmatprep.subr.mxu0 0.0
      %1625 = vmatpush1.xpose.msra.mxu0 0.0
      %1626 = vmatprep.subr.mxu0 0.0
      %1627 = vmatpush1.xpose.msra.mxu0 0.0
      %1628 = vmatprep.subr.mxu0 0.0
      %1629 = vmatpush1.xpose.msra.mxu0 0.0
      %1630 = vmatprep.subr.mxu0 0.0
      %1631 = vmatpush1.xpose.msra.mxu0 0.0
      %1632 = vmatprep.subr.mxu0 0.0
      %1633 = vmatpush1.xpose.msra.mxu0 0.0
      %1634 = vmatprep.subr.mxu0 0.0
      %1635 = vmatpush1.xpose.msra.mxu0 0.0
      %1636 = vmatprep.subr.mxu0 0.0
      %1637 = vmatpush1.xpose.msra.mxu0 0.0
      %1638 = vmatprep.subr.mxu0 0.0
      %1639 = vmatpush1.xpose.msra.mxu0 0.0
      %1640 = vmatprep.subr.mxu0 0.0
      %1641 = vmatpush1.xpose.msra.mxu0 0.0
      %1642 = vmatprep.subr.mxu0 0.0
      %1643 = vmatpush1.xpose.msra.mxu0 0.0
      %1644 = vmatprep.subr.mxu0 0.0
      %1645 = vmatpush1.xpose.msra.mxu0 0.0
      %1646 = vmatprep.subr.mxu0 0.0
      %1647 = vmatpush1.xpose.msra.mxu0 0.0
      %1648 = vmatprep.subr.mxu0 0.0
      %1649 = vmatpush1.xpose.msra.mxu0 0.0
      %1650 = vmatprep.subr.mxu0 0.0
      %1651 = vmatpush1.xpose.msra.mxu0 0.0
      %1652 = vmatprep.subr.mxu0 0.0
      %1653 = vmatpush1.xpose.msra.mxu0 0.0
      %1654 = vmatprep.subr.mxu0 0.0
      %1655 = vmatpush1.xpose.msra.mxu0 0.0
      %1656 = vmatprep.subr.mxu0 0.0
      %1657 = vmatpush1.xpose.msra.mxu0 0.0
      %1658 = vmatprep.subr.mxu0 0.0
      %1659 = vmatpush1.xpose.msra.mxu0 0.0
      %1660 = vmatprep.subr.mxu0 0.0
      %1661 = vmatpush1.xpose.msra.mxu0 0.0
      %1662 = vmatprep.subr.mxu0 0.0
      %1663 = vmatpush1.xpose.msra.mxu0 0.0
      %1664 = vmatprep.subr.mxu0 0.0
      %1665 = vmatpush1.xpose.msra.mxu0 0.0
      %1666 = vmatprep.subr.mxu0 0.0
      %1667 = vmatpush1.xpose.msra.mxu0 0.0
      %1668 = vmatprep.subr.mxu0 0.0
      %1669 = vmatpush1.xpose.msra.mxu0 0.0
      %1670 = vmatprep.subr.mxu0 0.0
      %1671 = vmatpush1.xpose.msra.mxu0 0.0
      %1672 = vmatprep.subr.mxu0 0.0
      %1673 = vmatpush1.xpose.msra.mxu0 0.0
      %1674 = vmatprep.subr.mxu0 0.0
      %1675 = vmatpush1.xpose.msra.mxu0 0.0
      %1676 = vmatprep.subr.mxu0 0.0
      %1677 = vmatpush1.xpose.msra.mxu0 0.0
      %1678 = vmatprep.subr.mxu0 0.0
      %1679 = vmatpush1.xpose.msra.mxu0 0.0
      %1680 = vmatprep.subr.mxu0 0.0
      %1681 = vmatpush1.xpose.msra.mxu0 0.0
      %1682 = vmatprep.subr.mxu0 0.0
      %1683 = vmatpush1.xpose.msra.mxu0 0.0
      %1684 = vmatprep.mubr.f32.mxu0 0.0
      %1685 = vmatmul.mubr.f32.gmra.mrb[0].mxu0 %v1615
      %v1686 = vpop.f32.mrb[0].mxu0
      %v1687 = vadd.f32 %v55, %v1686
      %v1688 = vpop.f32.mrb[0].mxu0
      %1689 = vdwg.mxu0
      %v1690 = vsel %vm457, %v1610, -inf
      %1691 = vmax.xlane.f32.xlu0 %v1690
      %v1692 = vpop.xlane.xlu0 %1691
      %v1693 = vsel %vm457, %v1687, -inf
      %1694 = vmax.xlane.f32.xlu0 %v1693
      %v1695 = vpop.xlane.xlu0 %1694
      %v1696 = vsub.f32 %v1610, %v1692
      %v1697 = vsub.f32 %v1687, %v1695
      %v1698 = vmul.f32 %v1696, 1.442695
      %v1699 = vpow.pop %v1698
      %v1700 = vmul.f32 %v1697, 1.442695
      %v1701 = vpow.pop %v1700
      %v1702 = vsel %vm457, %v1699, 0.0
      %1703 = vadd.xlane.f32.xlu0 %v1702
      %v1704 = vpop.xlane.xlu0 %1703
      %v1705 = vsel %vm457, %v1701, 0.0
      %1706 = vadd.xlane.f32.xlu0 %v1705
      %v1707 = vpop.xlane.xlu0 %1706
      %v1708 = vrcp.pop %v1704
      %v1709 = vmul.f32 %v1699, %v1708
      %v1710 = vrcp.pop %v1707
      %v1711 = vmul.f32 %v1701, %v1710
      %v1713 = vsel %vm480, %v1709, 0
      %v1716 = vsel %vm484, %v76, 0
      %1718 = vmatprep.subr.mxu0 0.0
      %1719 = vmatpush1.msra.mxu0 %v1716
      %1720 = vmatprep.subr.mxu0 0.0
      %1721 = vmatpush1.msra.mxu0 0.0
      %1722 = vmatprep.subr.mxu0 0.0
      %1723 = vmatpush1.msra.mxu0 0.0
      %1724 = vmatprep.subr.mxu0 0.0
      %1725 = vmatpush1.msra.mxu0 0.0
      %1726 = vmatprep.subr.mxu0 0.0
      %1727 = vmatpush1.msra.mxu0 0.0
      %1728 = vmatprep.subr.mxu0 0.0
      %1729 = vmatpush1.msra.mxu0 0.0
      %1730 = vmatprep.subr.mxu0 0.0
      %1731 = vmatpush1.msra.mxu0 0.0
      %1732 = vmatprep.subr.mxu0 0.0
      %1733 = vmatpush1.msra.mxu0 0.0
      %1734 = vmatprep.subr.mxu0 0.0
      %1735 = vmatpush1.msra.mxu0 0.0
      %1736 = vmatprep.subr.mxu0 0.0
      %1737 = vmatpush1.msra.mxu0 0.0
      %1738 = vmatprep.subr.mxu0 0.0
      %1739 = vmatpush1.msra.mxu0 0.0
      %1740 = vmatprep.subr.mxu0 0.0
      %1741 = vmatpush1.msra.mxu0 0.0
      %1742 = vmatprep.subr.mxu0 0.0
      %1743 = vmatpush1.msra.mxu0 0.0
      %1744 = vmatprep.subr.mxu0 0.0
      %1745 = vmatpush1.msra.mxu0 0.0
      %1746 = vmatprep.subr.mxu0 0.0
      %1747 = vmatpush1.msra.mxu0 0.0
      %1748 = vmatprep.subr.mxu0 0.0
      %1749 = vmatpush1.msra.mxu0 0.0
      %1750 = vmatprep.subr.mxu0 0.0
      %1751 = vmatpush1.msra.mxu0 0.0
      %1752 = vmatprep.subr.mxu0 0.0
      %1753 = vmatpush1.msra.mxu0 0.0
      %1754 = vmatprep.subr.mxu0 0.0
      %1755 = vmatpush1.msra.mxu0 0.0
      %1756 = vmatprep.subr.mxu0 0.0
      %1757 = vmatpush1.msra.mxu0 0.0
      %1758 = vmatprep.subr.mxu0 0.0
      %1759 = vmatpush1.msra.mxu0 0.0
      %1760 = vmatprep.subr.mxu0 0.0
      %1761 = vmatpush1.msra.mxu0 0.0
      %1762 = vmatprep.subr.mxu0 0.0
      %1763 = vmatpush1.msra.mxu0 0.0
      %1764 = vmatprep.subr.mxu0 0.0
      %1765 = vmatpush1.msra.mxu0 0.0
      %1766 = vmatprep.subr.mxu0 0.0
      %1767 = vmatpush1.msra.mxu0 0.0
      %1768 = vmatprep.subr.mxu0 0.0
      %1769 = vmatpush1.msra.mxu0 0.0
      %1770 = vmatprep.subr.mxu0 0.0
      %1771 = vmatpush1.msra.mxu0 0.0
      %1772 = vmatprep.subr.mxu0 0.0
      %1773 = vmatpush1.msra.mxu0 0.0
      %1774 = vmatprep.subr.mxu0 0.0
      %1775 = vmatpush1.msra.mxu0 0.0
      %1776 = vmatprep.subr.mxu0 0.0
      %1777 = vmatpush1.msra.mxu0 0.0
      %1778 = vmatprep.subr.mxu0 0.0
      %1779 = vmatpush1.msra.mxu0 0.0
      %1780 = vmatprep.subr.mxu0 0.0
      %1781 = vmatpush1.msra.mxu0 0.0
      %1782 = vmatprep.mubr.f32.mxu0 0.0
      %1783 = vmatmul.mubr.f32.gmra.mrb[0].mxu0 %v1713
      %v1784 = vpop.f32.mrb[0].mxu0
      %v1785 = vadd.f32 0.0, %v1784
      %v1786 = vpop.f32.mrb[0].mxu0
      %1787 = vdwg.mxu0
      %v1789 = vsel %vm480, %v1711, 0
      %v1792 = vsel %vm484, %v77, 0
      %1794 = vmatprep.subr.mxu0 0.0
      %1795 = vmatpush1.msra.mxu0 %v1792
      %1796 = vmatprep.subr.mxu0 0.0
      %1797 = vmatpush1.msra.mxu0 0.0
      %1798 = vmatprep.subr.mxu0 0.0
      %1799 = vmatpush1.msra.mxu0 0.0
      %1800 = vmatprep.subr.mxu0 0.0
      %1801 = vmatpush1.msra.mxu0 0.0
      %1802 = vmatprep.subr.mxu0 0.0
      %1803 = vmatpush1.msra.mxu0 0.0
      %1804 = vmatprep.subr.mxu0 0.0
      %1805 = vmatpush1.msra.mxu0 0.0
      %1806 = vmatprep.subr.mxu0 0.0
      %1807 = vmatpush1.msra.mxu0 0.0
      %1808 = vmatprep.subr.mxu0 0.0
      %1809 = vmatpush1.msra.mxu0 0.0
      %1810 = vmatprep.subr.mxu0 0.0
      %1811 = vmatpush1.msra.mxu0 0.0
      %1812 = vmatprep.subr.mxu0 0.0
      %1813 = vmatpush1.msra.mxu0 0.0
      %1814 = vmatprep.subr.mxu0 0.0
      %1815 = vmatpush1.msra.mxu0 0.0
      %1816 = vmatprep.subr.mxu0 0.0
      %1817 = vmatpush1.msra.mxu0 0.0
      %1818 = vmatprep.subr.mxu0 0.0
      %1819 = vmatpush1.msra.mxu0 0.0
      %1820 = vmatprep.subr.mxu0 0.0
      %1821 = vmatpush1.msra.mxu0 0.0
      %1822 = vmatprep.subr.mxu0 0.0
      %1823 = vmatpush1.msra.mxu0 0.0
      %1824 = vmatprep.subr.mxu0 0.0
      %1825 = vmatpush1.msra.mxu0 0.0
      %1826 = vmatprep.subr.mxu0 0.0
      %1827 = vmatpush1.msra.mxu0 0.0
      %1828 = vmatprep.subr.mxu0 0.0
      %1829 = vmatpush1.msra.mxu0 0.0
      %1830 = vmatprep.subr.mxu0 0.0
      %1831 = vmatpush1.msra.mxu0 0.0
      %1832 = vmatprep.subr.mxu0 0.0
      %1833 = vmatpush1.msra.mxu0 0.0
      %1834 = vmatprep.subr.mxu0 0.0
      %1835 = vmatpush1.msra.mxu0 0.0
      %1836 = vmatprep.subr.mxu0 0.0
      %1837 = vmatpush1.msra.mxu0 0.0
      %1838 = vmatprep.subr.mxu0 0.0
      %1839 = vmatpush1.msra.mxu0 0.0
      %1840 = vmatprep.subr.mxu0 0.0
      %1841 = vmatpush1.msra.mxu0 0.0
      %1842 = vmatprep.subr.mxu0 0.0
      %1843 = vmatpush1.msra.mxu0 0.0
      %1844 = vmatprep.subr.mxu0 0.0
      %1845 = vmatpush1.msra.mxu0 0.0
      %1846 = vmatprep.subr.mxu0 0.0
      %1847 = vmatpush1.msra.mxu0 0.0
      %1848 = vmatprep.subr.mxu0 0.0
      %1849 = vmatpush1.msra.mxu0 0.0
      %1850 = vmatprep.subr.mxu0 0.0
      %1851 = vmatpush1.msra.mxu0 0.0
      %1852 = vmatprep.subr.mxu0 0.0
      %1853 = vmatpush1.msra.mxu0 0.0
      %1854 = vmatprep.subr.mxu0 0.0
      %1855 = vmatpush1.msra.mxu0 0.0
      %1856 = vmatprep.subr.mxu0 0.0
      %1857 = vmatpush1.msra.mxu0 0.0
      %1858 = vmatprep.mubr.f32.mxu0 0.0
      %1859 = vmatmul.mubr.f32.gmra.mrb[0].mxu0 %v1789
      %v1860 = vpop.f32.mrb[0].mxu0
      %v1861 = vadd.f32 0.0, %v1860
      %v1862 = vpop.f32.mrb[0].mxu0
      %1863 = vdwg.mxu0
      %v1866 = vrot.slane %v1861, 7
      %v1867 = vsel %vm637, %v1866, %v1785
      %v1868 = vsel %vm306, %v1867, 0
      %1870 = vmatprep.subr.mxu0 0.0
      %1871 = vmatpush1.msra.mxu0 %v52
      %1872 = vmatprep.subr.mxu0 0.0
      %1873 = vmatpush1.msra.mxu0 0.0
      %1874 = vmatprep.subr.mxu0 0.0
      %1875 = vmatpush1.msra.mxu0 0.0
      %1876 = vmatprep.subr.mxu0 0.0
      %1877 = vmatpush1.msra.mxu0 0.0
      %1878 = vmatprep.subr.mxu0 0.0
      %1879 = vmatpush1.msra.mxu0 0.0
      %1880 = vmatprep.subr.mxu0 0.0
      %1881 = vmatpush1.msra.mxu0 0.0
      %1882 = vmatprep.subr.mxu0 0.0
      %1883 = vmatpush1.msra.mxu0 0.0
      %1884 = vmatprep.subr.mxu0 0.0
      %1885 = vmatpush1.msra.mxu0 0.0
      %1886 = vmatprep.subr.mxu0 0.0
      %1887 = vmatpush1.msra.mxu0 0.0
      %1888 = vmatprep.subr.mxu0 0.0
      %1889 = vmatpush1.msra.mxu0 0.0
      %1890 = vmatprep.subr.mxu0 0.0
      %1891 = vmatpush1.msra.mxu0 0.0
      %1892 = vmatprep.subr.mxu0 0.0
      %1893 = vmatpush1.msra.mxu0 0.0
      %1894 = vmatprep.subr.mxu0 0.0
      %1895 = vmatpush1.msra.mxu0 0.0
      %1896 = vmatprep.subr.mxu0 0.0
      %1897 = vmatpush1.msra.mxu0 0.0
      %1898 = vmatprep.subr.mxu0 0.0
      %1899 = vmatpush1.msra.mxu0 0.0
      %1900 = vmatprep.subr.mxu0 0.0
      %1901 = vmatpush1.msra.mxu0 0.0
      %1902 = vmatprep.subr.mxu0 0.0
      %1903 = vmatpush1.msra.mxu0 0.0
      %1904 = vmatprep.subr.mxu0 0.0
      %1905 = vmatpush1.msra.mxu0 0.0
      %1906 = vmatprep.subr.mxu0 0.0
      %1907 = vmatpush1.msra.mxu0 0.0
      %1908 = vmatprep.subr.mxu0 0.0
      %1909 = vmatpush1.msra.mxu0 0.0
      %1910 = vmatprep.subr.mxu0 0.0
      %1911 = vmatpush1.msra.mxu0 0.0
      %1912 = vmatprep.subr.mxu0 0.0
      %1913 = vmatpush1.msra.mxu0 0.0
      %1914 = vmatprep.subr.mxu0 0.0
      %1915 = vmatpush1.msra.mxu0 0.0
      %1916 = vmatprep.subr.mxu0 0.0
      %1917 = vmatpush1.msra.mxu0 0.0
      %1918 = vmatprep.subr.mxu0 0.0
      %1919 = vmatpush1.msra.mxu0 0.0
      %1920 = vmatprep.subr.mxu0 0.0
      %1921 = vmatpush1.msra.mxu0 0.0
      %1922 = vmatprep.subr.mxu0 0.0
      %1923 = vmatpush1.msra.mxu0 0.0
      %1924 = vmatprep.subr.mxu0 0.0
      %1925 = vmatpush1.msra.mxu0 0.0
      %1926 = vmatprep.subr.mxu0 0.0
      %1927 = vmatpush1.msra.mxu0 0.0
      %1928 = vmatprep.subr.mxu0 0.0
      %1929 = vmatpush1.msra.mxu0 0.0
      %1930 = vmatprep.subr.mxu0 0.0
      %1931 = vmatpush1.msra.mxu0 0.0
      %1932 = vmatprep.subr.mxu0 0.0
      %1933 = vmatpush1.msra.mxu0 0.0
      %1934 = vmatprep.mubr.f32.mxu0 0.0
      %1935 = vmatmul.mubr.f32.gmra.mrb[0].mxu0 %v1868
      %v1936 = vpop.f32.mrb[0].mxu0
      %v1937 = vadd.f32 0.0, %v1936
      %v1938 = vpop.f32.mrb[0].mxu0
      %1939 = vdwg.mxu0
      %v1940 = vadd.f32 %v1535, %v1937
      %1942 = vrot.lane.b32.xlu0 %v194, 96
      %v1943 = vpop.permute.xlu0 %1942
      %1945 = vst.msk [vmem:[#allocation3] sm:$0x3] %vm79, %v1943
      %1946 = vst.msk [vmem:[#allocation2] sm:$0x3] %vm79, %v1940
      %1947 = vrot.lane.b32.xlu0 %v200, 64
      %v1948 = vpop.permute.xlu0 %1947
      %1950 = vst.msk [vmem:[#allocation2] sm:$0x3] %vm85, %v1948
      %s1952 = scalar_lea.vmem [#allocation4], %s96
      %1953 = vst.msk [vmem:[%s1952] sm:$0x3] %vm79, %v209
      %1955 = vrot.lane.b32.xlu0 %v1940, 32
      %v1956 = vpop.permute.xlu0 %1955
      %1958 = vst.msk [vmem:[%s1952] sm:$0x3] %vm85, %v1956
    $region46: #{tpu_custom_call.1} parent=1 // loop_footer
      %s93 = sadd.s32 1, %s89
    $region47: #{tpu_custom_call.1} parent=1 // loop_footer_branch
      %88 = sbr.rel target = $region43
    $region48: #{tpu_custom_call.1} parent=1 // loop_exit
      _
    // Predicated region
    $region49: #{tpu_custom_call.1} parent=1 // pred_check
      _
    $region50: #{tpu_custom_call.1} parent=1 // pred_check_branch
      %1960 = sbr.rel (0) target = $region52
    $region51: #{tpu_custom_call.1} parent=1 // pred_region
      %s1962 = ssub.s32 256, 256
      %1963 = vsyncadd [#allocation5], %s1962
      %s1964 = sshll.u32 [#allocation4], 4
      %s1965 = int_to_ptr.vmem [resolvable:$true] %s1964
      %1970 = dma.vmem_to_hbm [thread:$0]  %s1965, 256, %s10, [#allocation5], 32, 32, 2
    $region52: #{tpu_custom_call.1} parent=1 // pred_fallthru
      _
    // Predicated region
    $region53: #{tpu_custom_call.1} parent=1 // pred_check
      _
    $region54: #{tpu_custom_call.1} parent=1 // pred_check_branch
      %1972 = sbr.rel (0) target = $region56
    $region55: #{tpu_custom_call.1} parent=1 // pred_region
      %1973 = dma.done [#allocation5], 256
    $region56: #{tpu_custom_call.1} parent=1 // pred_fallthru
      _
    %1974 = vsyncpa [#allocation5], 1

</llo_original>
